<compile_context>
chip_gen: v6e
topology: v6e:2x2x1
jax: 0.10.0
libtpu: 0.0.40
codegen_flags: <defaults>
</compile_context>

<pallas_src>
import numpy as np
import jax
import jax.numpy as jnp
from jax import lax
from jax.experimental import pallas as pl
from jax.experimental.pallas import tpu as pltpu

_PACK = 4  # timesteps packed per lane-dense output row (4 * H = 128 lanes for H = 32)


def _lstm_fused_kernel(len_ref, xw_ref, whh_ref, out_ref):
    """Whole-sequence LSTM recurrence in a single invocation.

    len_ref: (B, 1) int32      -- valid lengths per batch row
    xw_ref : (T_pad, B, 4H) f32 -- x @ W_ih + bias, time-major, gate order i,f,g,o
    whh_ref: (H, 4H)   bf16     -- fused recurrent weights (MXU operand)
    out_ref: (G, B, 4H) f32     -- lane-packed hidden states: row g holds timesteps
                                   [4g .. 4g+3] side by side along lanes.
    """
    T_pad, B, G4 = xw_ref.shape
    H = G4 // 4
    num_groups = out_ref.shape[0]

    w_hh = whh_ref[...]          # bf16; resident in vregs/VMEM across the whole loop
    lengths = len_ref[...]       # (B, 1) int32

    # Hoisted lane-index mask selecting the g-gate block [2H, 3H) of the fused gates.
    lane = lax.broadcasted_iota(jnp.int32, (B, G4), 1)
    g_block = (lane >= 2 * H) & (lane < 3 * H)

    def group_step(g, carry):
        h, c = carry
        outs = []
        for r in range(_PACK):                                  # static inner unroll
            t = g * _PACK + r
            # single lane-dense (B, 4H) bf16 matmul on the recurrent critical path
            gates = xw_ref[t] + jnp.dot(h.astype(jnp.bfloat16), w_hh,
                                        preferred_element_type=jnp.float32)
            # two full-width EUP pushes (sigmoid + tanh over (B,4H)) + one vsel,
            # instead of four quarter-lane transcendental pushes.  f32 math (v5e-safe).
            act = jnp.where(g_block, jnp.tanh(gates), jax.nn.sigmoid(gates))
            i_g = act[:, 0 * H:1 * H]
            f_g = act[:, 1 * H:2 * H]
            g_g = act[:, 2 * H:3 * H]
            o_g = act[:, 3 * H:4 * H]
            c_new = f_g * c + i_g * g_g
            h_new = o_g * jnp.tanh(c_new)
            # packed-sequence semantics: freeze state and zero outputs once t >= length[b]
            keep = t < lengths                                  # (B, 1) bool
            h = jnp.where(keep, h_new, h)
            c = jnp.where(keep, c_new, c)
            outs.append(jnp.where(keep, h_new, 0.0))            # store path off the carry
        # one unmasked, lane-dense (B, 128) store per 4 timesteps
        out_ref[g] = jnp.concatenate(outs, axis=-1).astype(out_ref.dtype)
        return (h, c)

    zeros = jnp.zeros((B, H), jnp.float32)
    unroll = True if num_groups <= 8 else 4                     # cap unroll at scale
    lax.fori_loop(0, num_groups, group_step, (zeros, zeros), unroll=unroll)


def word_hidden_rep_pallas(x_bte, lengths_b, w_ih, w_hh, bias):
    """x_bte: (B,T,E) f32; lengths_b: (B,) int32; w_ih: (4,E,H); w_hh: (4,H,H); bias: (4,H)."""
    B, T, E = x_bte.shape
    H = w_hh.shape[-1]
    G4 = 4 * H
    T_pad = ((T + _PACK - 1) // _PACK) * _PACK
    n_groups = T_pad // _PACK

    # Fuse gates: (4, E, H) -> (E, 4H); gate order (i, f, g, o) preserved column-block-wise.
    w_ih_f = jnp.transpose(w_ih, (1, 0, 2)).reshape(E, G4)
    w_hh_f = jnp.transpose(w_hh, (1, 0, 2)).reshape(H, G4).astype(jnp.bfloat16)
    bias_f = bias.reshape(G4).astype(jnp.float32)

    # Hoist the input projection (+ bias) out of the serial recurrence: one bf16 matmul
    # accumulating in f32 on the 918 TF/s (v6e) / ~1 PF/s (v7x) MXU path.
    x_tbe = jnp.transpose(x_bte, (1, 0, 2))                                  # (T, B, E)
    xw_tbg = jnp.einsum('tbe,eg->tbg',
                        x_tbe.astype(jnp.bfloat16), w_ih_f.astype(jnp.bfloat16),
                        preferred_element_type=jnp.float32) + bias_f         # (T, B, 4H) f32
    if T_pad != T:
        # padded timesteps are never "kept" (t >= length for all rows), value irrelevant
        xw_tbg = jnp.pad(xw_tbg, ((0, T_pad - T), (0, 0), (0, 0)))

    len_b1 = lengths_b.reshape(B, 1).astype(jnp.int32)

    # Keep everything VMEM-resident; raise scoped VMEM if needed, clamp to 64 MiB (v7x).
    resident_bytes = (xw_tbg.size * 4 + n_groups * B * G4 * 4 + H * G4 * 2 + B * 4)
    vmem_limit = int(min(max(2 * resident_bytes, 32 * 1024 * 1024), 64 * 1024 * 1024))

    out_gbp = pl.pallas_call(
        _lstm_fused_kernel,
        out_shape=jax.ShapeDtypeStruct((n_groups, B, G4), jnp.float32),
        in_specs=[
            pl.BlockSpec(memory_space=pltpu.MemorySpace.VMEM),   # lengths (B,1)
            pl.BlockSpec(memory_space=pltpu.MemorySpace.VMEM),   # x@W_ih + b (T_pad,B,4H)
            pl.BlockSpec(memory_space=pltpu.MemorySpace.VMEM),   # fused W_hh (H,4H) bf16
        ],
        out_specs=pl.BlockSpec(memory_space=pltpu.MemorySpace.VMEM),
        compiler_params=pltpu.CompilerParams(vmem_limit_bytes=vmem_limit),
    )(len_b1, xw_tbg, w_hh_f)

    # Unscramble lane-packed output: (G, B, 4, H) -> (G, 4, B, H) -> (T_pad, B, H)
    out_tbh = (out_gbp.reshape(n_groups, B, _PACK, H)
                      .transpose(0, 2, 1, 3)
                      .reshape(T_pad, B, H))[:T]
    return jnp.transpose(out_tbh, (1, 0, 2))   # (B, T, H); caller slices to max(lengths)


def lstm_reference(x_bte, lengths_b, w_ih, w_hh, bias):
    """Pure-JAX f32 reference (mirrors PyTorch packed LSTM + zero-padded output)."""
    B, T, E = x_bte.shape
    H = w_hh.shape[-1]
    x_tbe = jnp.transpose(x_bte, (1, 0, 2))

    def step(carry, inp):
        h, c = carry
        xt, t = inp
        gates = [xt @ w_ih[k] + h @ w_hh[k] + bias[k] for k in range(4)]
        i = jax.nn.sigmoid(gates[0]); f = jax.nn.sigmoid(gates[1])
        g = jnp.tanh(gates[2]);       o = jax.nn.sigmoid(gates[3])
        c_new = f * c + i * g
        h_new = o * jnp.tanh(c_new)
        valid = (t < lengths_b)[:, None].astype(jnp.float32)
        h2 = valid * h_new + (1.0 - valid) * h
        c2 = valid * c_new + (1.0 - valid) * c
        return (h2, c2), valid * h2

    init = (jnp.zeros((B, H), jnp.float32), jnp.zeros((B, H), jnp.float32))
    _, out_tbh = lax.scan(step, init, (x_tbe, jnp.arange(T, dtype=jnp.int32)))
    return jnp.transpose(out_tbh, (1, 0, 2))


if __name__ == "__main__":
    # Module config implied: encoderExtractor='LSTM', encoder_Bidirectional=False,
    # if_inint_hidden=False, embedding_dim=E, encoder_dim=H (== hidden_dim).
    B, T, E, H = 8, 10, 32, 32

    key = jax.random.PRNGKey(0)
    k_x, k_wih, k_whh, k_bih, k_bhh = jax.random.split(key, 5)

    # Deterministic PyTorch-style LSTM init: U(-1/sqrt(H), 1/sqrt(H)), gate order i,f,g,o.
    bound = 1.0 / np.sqrt(H)
    w_ih = jax.random.uniform(k_wih, (4, E, H), jnp.float32, -bound, bound)
    w_hh = jax.random.uniform(k_whh, (4, H, H), jnp.float32, -bound, bound)
    b_ih = jax.random.uniform(k_bih, (4, H), jnp.float32, -bound, bound)
    b_hh = jax.random.uniform(k_bhh, (4, H), jnp.float32, -bound, bound)
    bias = b_ih + b_hh

    embedding_represent = jax.random.normal(k_x, (B, T, E), jnp.float32)
    word_seq_lengths = jnp.array([[10], [7], [10], [3], [5], [9], [2], [6]], dtype=jnp.int32)
    lengths = word_seq_lengths.squeeze(-1)

    out_full = word_hidden_rep_pallas(embedding_represent, lengths, w_ih, w_hh, bias)
    out_full = jax.block_until_ready(out_full)

    # pad_packed_sequence returns seq length == max(lengths); dropout is identity (eval).
    t_max = int(jnp.max(lengths))
    feature_out = out_full[:, :t_max, :]

    ref = lstm_reference(embedding_represent, lengths, w_ih, w_hh, bias)[:, :t_max, :]
    # Tolerance loosened vs. the pure-f32 version: recurrent and input-projection matmuls
    # now use bf16 MXU operands (f32 accumulation).
    np.testing.assert_allclose(np.asarray(feature_out), np.asarray(ref),
                               rtol=2.5e-2, atol=2.5e-2)

    print("KERNEL_OK")
</pallas_src>

<mosaic_0001>
module attributes {stable_mosaic.version = 11 : i64} {
  func.func @_lstm_fused_kernel(%arg0: memref<8x1xi32, #tpu.memory_space<vmem>>, %arg1: memref<12x8x128xf32, #tpu.memory_space<vmem>>, %arg2: memref<32x128xbf16, #tpu.memory_space<vmem>>, %arg3: memref<3x8x128xf32, #tpu.memory_space<vmem>>) attributes {dimension_semantics = [], scalar_prefetch = 0 : i64, scratch_operands = 0 : i64, tpu.core_type = #tpu.core_type<tc>} {
    %c0 = arith.constant 0 : index
    %c0_0 = arith.constant 0 : index
    %0 = vector.load %arg2[%c0, %c0_0] : memref<32x128xbf16, #tpu.memory_space<vmem>>, vector<32x128xbf16>
    %c0_1 = arith.constant 0 : index
    %c0_2 = arith.constant 0 : index
    %1 = vector.load %arg0[%c0_1, %c0_2] : memref<8x1xi32, #tpu.memory_space<vmem>>, vector<8x1xi32>
    %2 = tpu.iota {dimensions = array<i32: 1>} : vector<8x128xi32>
    %c64_i32 = arith.constant 64 : i32
    %3 = vector.broadcast %c64_i32 : i32 to vector<8x128xi32>
    %4 = arith.cmpi sge, %2, %3 : vector<8x128xi32>
    %c96_i32 = arith.constant 96 : i32
    %5 = vector.broadcast %c96_i32 : i32 to vector<8x128xi32>
    %6 = arith.cmpi slt, %2, %5 : vector<8x128xi32>
    %7 = arith.andi %4, %6 : vector<8x128xi1>
    %cst = arith.constant 0.000000e+00 : f32
    %8 = vector.broadcast %cst : f32 to vector<8x32xf32>
    %c0_i32 = arith.constant 0 : i32
    %c4_i32 = arith.constant 4 : i32
    %9 = arith.muli %c0_i32, %c4_i32 : i32
    %c0_i32_3 = arith.constant 0 : i32
    %10 = arith.addi %9, %c0_i32_3 : i32
    %11 = arith.index_cast %10 : i32 to index
    %c0_4 = arith.constant 0 : index
    %c0_5 = arith.constant 0 : index
    %12 = vector.load %arg1[%11, %c0_4, %c0_5] : memref<12x8x128xf32, #tpu.memory_space<vmem>>, vector<1x8x128xf32>
    %13 = vector.shape_cast %12 : vector<1x8x128xf32> to vector<8x128xf32>
    %14 = arith.truncf %8 : vector<8x32xf32> to vector<8x32xbf16>
    %cst_6 = arith.constant dense<0.000000e+00> : vector<8x128xf32>
    %15 = tpu.matmul %14, %0, %cst_6 {dimension_numbers = #tpu.dot_dimension_numbers<[1], [0], [0], [1], [0, 0, 1, 1], [], []>} : vector<8x32xbf16>, vector<32x128xbf16>, vector<8x128xf32> -> vector<8x128xf32>
    %16 = arith.addf %13, %15 : vector<8x128xf32>
    %17 = math.tanh %16 : vector<8x128xf32>
    %18 = arith.negf %16 : vector<8x128xf32>
    %19 = math.exp %18 : vector<8x128xf32>
    %cst_7 = arith.constant 1.000000e+00 : f32
    %20 = vector.broadcast %cst_7 : f32 to vector<8x128xf32>
    %21 = arith.addf %20, %19 : vector<8x128xf32>
    %22 = arith.divf %20, %21 : vector<8x128xf32>
    %23 = arith.select %7, %17, %22 : vector<8x128xi1>, vector<8x128xf32>
    %24 = vector.extract_strided_slice %23 {offsets = [0, 0], sizes = [8, 32], strides = [1, 1]} : vector<8x128xf32> to vector<8x32xf32>
    %25 = vector.extract_strided_slice %23 {offsets = [0, 32], sizes = [8, 32], strides = [1, 1]} : vector<8x128xf32> to vector<8x32xf32>
    %26 = vector.extract_strided_slice %23 {offsets = [0, 64], sizes = [8, 32], strides = [1, 1]} : vector<8x128xf32> to vector<8x32xf32>
    %27 = vector.extract_strided_slice %23 {offsets = [0, 96], sizes = [8, 32], strides = [1, 1]} : vector<8x128xf32> to vector<8x32xf32>
    %28 = arith.mulf %25, %8 : vector<8x32xf32>
    %29 = arith.mulf %24, %26 : vector<8x32xf32>
    %30 = arith.addf %28, %29 : vector<8x32xf32>
    %31 = math.tanh %30 : vector<8x32xf32>
    %32 = arith.mulf %27, %31 : vector<8x32xf32>
    %33 = vector.broadcast %10 : i32 to vector<8x1xi32>
    %34 = arith.cmpi slt, %33, %1 : vector<8x1xi32>
    %35 = vector.shape_cast %34 : vector<8x1xi1> to vector<8x1xi1>
    %36 = vector.broadcast %35 : vector<8x1xi1> to vector<8x32xi1>
    %37 = arith.select %36, %32, %8 : vector<8x32xi1>, vector<8x32xf32>
    %38 = vector.shape_cast %34 : vector<8x1xi1> to vector<8x1xi1>
    %39 = vector.broadcast %38 : vector<8x1xi1> to vector<8x32xi1>
    %40 = arith.select %39, %30, %8 : vector<8x32xi1>, vector<8x32xf32>
    %cst_8 = arith.constant 0.000000e+00 : f32
    %41 = vector.shape_cast %34 : vector<8x1xi1> to vector<8x1xi1>
    %42 = vector.broadcast %41 : vector<8x1xi1> to vector<8x32xi1>
    %43 = vector.broadcast %cst_8 : f32 to vector<8x32xf32>
    %44 = arith.select %42, %32, %43 : vector<8x32xi1>, vector<8x32xf32>
    %c4_i32_9 = arith.constant 4 : i32
    %45 = arith.muli %c0_i32, %c4_i32_9 : i32
    %c1_i32 = arith.constant 1 : i32
    %46 = arith.addi %45, %c1_i32 : i32
    %47 = arith.index_cast %46 : i32 to index
    %c0_10 = arith.constant 0 : index
    %c0_11 = arith.constant 0 : index
    %48 = vector.load %arg1[%47, %c0_10, %c0_11] : memref<12x8x128xf32, #tpu.memory_space<vmem>>, vector<1x8x128xf32>
    %49 = vector.shape_cast %48 : vector<1x8x128xf32> to vector<8x128xf32>
    %50 = arith.truncf %37 : vector<8x32xf32> to vector<8x32xbf16>
    %cst_12 = arith.constant dense<0.000000e+00> : vector<8x128xf32>
    %51 = tpu.matmul %50, %0, %cst_12 {dimension_numbers = #tpu.dot_dimension_numbers<[1], [0], [0], [1], [0, 0, 1, 1], [], []>} : vector<8x32xbf16>, vector<32x128xbf16>, vector<8x128xf32> -> vector<8x128xf32>
    %52 = arith.addf %49, %51 : vector<8x128xf32>
    %53 = math.tanh %52 : vector<8x128xf32>
    %54 = arith.negf %52 : vector<8x128xf32>
    %55 = math.exp %54 : vector<8x128xf32>
    %cst_13 = arith.constant 1.000000e+00 : f32
    %56 = vector.broadcast %cst_13 : f32 to vector<8x128xf32>
    %57 = arith.addf %56, %55 : vector<8x128xf32>
    %58 = arith.divf %56, %57 : vector<8x128xf32>
    %59 = arith.select %7, %53, %58 : vector<8x128xi1>, vector<8x128xf32>
    %60 = vector.extract_strided_slice %59 {offsets = [0, 0], sizes = [8, 32], strides = [1, 1]} : vector<8x128xf32> to vector<8x32xf32>
    %61 = vector.extract_strided_slice %59 {offsets = [0, 32], sizes = [8, 32], strides = [1, 1]} : vector<8x128xf32> to vector<8x32xf32>
    %62 = vector.extract_strided_slice %59 {offsets = [0, 64], sizes = [8, 32], strides = [1, 1]} : vector<8x128xf32> to vector<8x32xf32>
    %63 = vector.extract_strided_slice %59 {offsets = [0, 96], sizes = [8, 32], strides = [1, 1]} : vector<8x128xf32> to vector<8x32xf32>
    %64 = arith.mulf %61, %40 : vector<8x32xf32>
    %65 = arith.mulf %60, %62 : vector<8x32xf32>
    %66 = arith.addf %64, %65 : vector<8x32xf32>
    %67 = math.tanh %66 : vector<8x32xf32>
    %68 = arith.mulf %63, %67 : vector<8x32xf32>
    %69 = vector.broadcast %46 : i32 to vector<8x1xi32>
    %70 = arith.cmpi slt, %69, %1 : vector<8x1xi32>
    %71 = vector.shape_cast %70 : vector<8x1xi1> to vector<8x1xi1>
    %72 = vector.broadcast %71 : vector<8x1xi1> to vector<8x32xi1>
    %73 = arith.select %72, %68, %37 : vector<8x32xi1>, vector<8x32xf32>
    %74 = vector.shape_cast %70 : vector<8x1xi1> to vector<8x1xi1>
    %75 = vector.broadcast %74 : vector<8x1xi1> to vector<8x32xi1>
    %76 = arith.select %75, %66, %40 : vector<8x32xi1>, vector<8x32xf32>
    %cst_14 = arith.constant 0.000000e+00 : f32
    %77 = vector.shape_cast %70 : vector<8x1xi1> to vector<8x1xi1>
    %78 = vector.broadcast %77 : vector<8x1xi1> to vector<8x32xi1>
    %79 = vector.broadcast %cst_14 : f32 to vector<8x32xf32>
    %80 = arith.select %78, %68, %79 : vector<8x32xi1>, vector<8x32xf32>
    %c4_i32_15 = arith.constant 4 : i32
    %81 = arith.muli %c0_i32, %c4_i32_15 : i32
    %c2_i32 = arith.constant 2 : i32
    %82 = arith.addi %81, %c2_i32 : i32
    %83 = arith.index_cast %82 : i32 to index
    %c0_16 = arith.constant 0 : index
    %c0_17 = arith.constant 0 : index
    %84 = vector.load %arg1[%83, %c0_16, %c0_17] : memref<12x8x128xf32, #tpu.memory_space<vmem>>, vector<1x8x128xf32>
    %85 = vector.shape_cast %84 : vector<1x8x128xf32> to vector<8x128xf32>
    %86 = arith.truncf %73 : vector<8x32xf32> to vector<8x32xbf16>
    %cst_18 = arith.constant dense<0.000000e+00> : vector<8x128xf32>
    %87 = tpu.matmul %86, %0, %cst_18 {dimension_numbers = #tpu.dot_dimension_numbers<[1], [0], [0], [1], [0, 0, 1, 1], [], []>} : vector<8x32xbf16>, vector<32x128xbf16>, vector<8x128xf32> -> vector<8x128xf32>
    %88 = arith.addf %85, %87 : vector<8x128xf32>
    %89 = math.tanh %88 : vector<8x128xf32>
    %90 = arith.negf %88 : vector<8x128xf32>
    %91 = math.exp %90 : vector<8x128xf32>
    %cst_19 = arith.constant 1.000000e+00 : f32
    %92 = vector.broadcast %cst_19 : f32 to vector<8x128xf32>
    %93 = arith.addf %92, %91 : vector<8x128xf32>
    %94 = arith.divf %92, %93 : vector<8x128xf32>
    %95 = arith.select %7, %89, %94 : vector<8x128xi1>, vector<8x128xf32>
    %96 = vector.extract_strided_slice %95 {offsets = [0, 0], sizes = [8, 32], strides = [1, 1]} : vector<8x128xf32> to vector<8x32xf32>
    %97 = vector.extract_strided_slice %95 {offsets = [0, 32], sizes = [8, 32], strides = [1, 1]} : vector<8x128xf32> to vector<8x32xf32>
    %98 = vector.extract_strided_slice %95 {offsets = [0, 64], sizes = [8, 32], strides = [1, 1]} : vector<8x128xf32> to vector<8x32xf32>
    %99 = vector.extract_strided_slice %95 {offsets = [0, 96], sizes = [8, 32], strides = [1, 1]} : vector<8x128xf32> to vector<8x32xf32>
    %100 = arith.mulf %97, %76 : vector<8x32xf32>
    %101 = arith.mulf %96, %98 : vector<8x32xf32>
    %102 = arith.addf %100, %101 : vector<8x32xf32>
    %103 = math.tanh %102 : vector<8x32xf32>
    %104 = arith.mulf %99, %103 : vector<8x32xf32>
    %105 = vector.broadcast %82 : i32 to vector<8x1xi32>
    %106 = arith.cmpi slt, %105, %1 : vector<8x1xi32>
    %107 = vector.shape_cast %106 : vector<8x1xi1> to vector<8x1xi1>
    %108 = vector.broadcast %107 : vector<8x1xi1> to vector<8x32xi1>
    %109 = arith.select %108, %104, %73 : vector<8x32xi1>, vector<8x32xf32>
    %110 = vector.shape_cast %106 : vector<8x1xi1> to vector<8x1xi1>
    %111 = vector.broadcast %110 : vector<8x1xi1> to vector<8x32xi1>
    %112 = arith.select %111, %102, %76 : vector<8x32xi1>, vector<8x32xf32>
    %cst_20 = arith.constant 0.000000e+00 : f32
    %113 = vector.shape_cast %106 : vector<8x1xi1> to vector<8x1xi1>
    %114 = vector.broadcast %113 : vector<8x1xi1> to vector<8x32xi1>
    %115 = vector.broadcast %cst_20 : f32 to vector<8x32xf32>
    %116 = arith.select %114, %104, %115 : vector<8x32xi1>, vector<8x32xf32>
    %c4_i32_21 = arith.constant 4 : i32
    %117 = arith.muli %c0_i32, %c4_i32_21 : i32
    %c3_i32 = arith.constant 3 : i32
    %118 = arith.addi %117, %c3_i32 : i32
    %119 = arith.index_cast %118 : i32 to index
    %c0_22 = arith.constant 0 : index
    %c0_23 = arith.constant 0 : index
    %120 = vector.load %arg1[%119, %c0_22, %c0_23] : memref<12x8x128xf32, #tpu.memory_space<vmem>>, vector<1x8x128xf32>
    %121 = vector.shape_cast %120 : vector<1x8x128xf32> to vector<8x128xf32>
    %122 = arith.truncf %109 : vector<8x32xf32> to vector<8x32xbf16>
    %cst_24 = arith.constant dense<0.000000e+00> : vector<8x128xf32>
    %123 = tpu.matmul %122, %0, %cst_24 {dimension_numbers = #tpu.dot_dimension_numbers<[1], [0], [0], [1], [0, 0, 1, 1], [], []>} : vector<8x32xbf16>, vector<32x128xbf16>, vector<8x128xf32> -> vector<8x128xf32>
    %124 = arith.addf %121, %123 : vector<8x128xf32>
    %125 = math.tanh %124 : vector<8x128xf32>
    %126 = arith.negf %124 : vector<8x128xf32>
    %127 = math.exp %126 : vector<8x128xf32>
    %cst_25 = arith.constant 1.000000e+00 : f32
    %128 = vector.broadcast %cst_25 : f32 to vector<8x128xf32>
    %129 = arith.addf %128, %127 : vector<8x128xf32>
    %130 = arith.divf %128, %129 : vector<8x128xf32>
    %131 = arith.select %7, %125, %130 : vector<8x128xi1>, vector<8x128xf32>
    %132 = vector.extract_strided_slice %131 {offsets = [0, 0], sizes = [8, 32], strides = [1, 1]} : vector<8x128xf32> to vector<8x32xf32>
    %133 = vector.extract_strided_slice %131 {offsets = [0, 32], sizes = [8, 32], strides = [1, 1]} : vector<8x128xf32> to vector<8x32xf32>
    %134 = vector.extract_strided_slice %131 {offsets = [0, 64], sizes = [8, 32], strides = [1, 1]} : vector<8x128xf32> to vector<8x32xf32>
    %135 = vector.extract_strided_slice %131 {offsets = [0, 96], sizes = [8, 32], strides = [1, 1]} : vector<8x128xf32> to vector<8x32xf32>
    %136 = arith.mulf %133, %112 : vector<8x32xf32>
    %137 = arith.mulf %132, %134 : vector<8x32xf32>
    %138 = arith.addf %136, %137 : vector<8x32xf32>
    %139 = math.tanh %138 : vector<8x32xf32>
    %140 = arith.mulf %135, %139 : vector<8x32xf32>
    %141 = vector.broadcast %118 : i32 to vector<8x1xi32>
    %142 = arith.cmpi slt, %141, %1 : vector<8x1xi32>
    %143 = vector.shape_cast %142 : vector<8x1xi1> to vector<8x1xi1>
    %144 = vector.broadcast %143 : vector<8x1xi1> to vector<8x32xi1>
    %145 = arith.select %144, %140, %109 : vector<8x32xi1>, vector<8x32xf32>
    %146 = vector.shape_cast %142 : vector<8x1xi1> to vector<8x1xi1>
    %147 = vector.broadcast %146 : vector<8x1xi1> to vector<8x32xi1>
    %148 = arith.select %147, %138, %112 : vector<8x32xi1>, vector<8x32xf32>
    %cst_26 = arith.constant 0.000000e+00 : f32
    %149 = vector.shape_cast %142 : vector<8x1xi1> to vector<8x1xi1>
    %150 = vector.broadcast %149 : vector<8x1xi1> to vector<8x32xi1>
    %151 = vector.broadcast %cst_26 : f32 to vector<8x32xf32>
    %152 = arith.select %150, %140, %151 : vector<8x32xi1>, vector<8x32xf32>
    %153 = tpu.concatenate %44, %80, %116, %152 in 1 : vector<8x32xf32>, vector<8x32xf32>, vector<8x32xf32>, vector<8x32xf32> -> vector<8x128xf32>
    %154 = arith.index_cast %c0_i32 : i32 to index
    %c0_27 = arith.constant 0 : index
    %c0_28 = arith.constant 0 : index
    %155 = vector.load %arg3[%154, %c0_27, %c0_28] : memref<3x8x128xf32, #tpu.memory_space<vmem>>, vector<1x8x128xf32>
    %156 = vector.shape_cast %155 : vector<1x8x128xf32> to vector<8x128xf32>
    %157 = vector.shape_cast %153 : vector<8x128xf32> to vector<1x8x128xf32>
    tpu.vector_store %arg3[%154, %c0_27, %c0_28], %157 {strides = array<i32>} : memref<3x8x128xf32, #tpu.memory_space<vmem>>, vector<1x8x128xf32>,
    %c1_i32_29 = arith.constant 1 : i32
    %c4_i32_30 = arith.constant 4 : i32
    %158 = arith.muli %c1_i32_29, %c4_i32_30 : i32
    %c0_i32_31 = arith.constant 0 : i32
    %159 = arith.addi %158, %c0_i32_31 : i32
    %160 = arith.index_cast %159 : i32 to index
    %c0_32 = arith.constant 0 : index
    %c0_33 = arith.constant 0 : index
    %161 = vector.load %arg1[%160, %c0_32, %c0_33] : memref<12x8x128xf32, #tpu.memory_space<vmem>>, vector<1x8x128xf32>
    %162 = vector.shape_cast %161 : vector<1x8x128xf32> to vector<8x128xf32>
    %163 = arith.truncf %145 : vector<8x32xf32> to vector<8x32xbf16>
    %cst_34 = arith.constant dense<0.000000e+00> : vector<8x128xf32>
    %164 = tpu.matmul %163, %0, %cst_34 {dimension_numbers = #tpu.dot_dimension_numbers<[1], [0], [0], [1], [0, 0, 1, 1], [], []>} : vector<8x32xbf16>, vector<32x128xbf16>, vector<8x128xf32> -> vector<8x128xf32>
    %165 = arith.addf %162, %164 : vector<8x128xf32>
    %166 = math.tanh %165 : vector<8x128xf32>
    %167 = arith.negf %165 : vector<8x128xf32>
    %168 = math.exp %167 : vector<8x128xf32>
    %cst_35 = arith.constant 1.000000e+00 : f32
    %169 = vector.broadcast %cst_35 : f32 to vector<8x128xf32>
    %170 = arith.addf %169, %168 : vector<8x128xf32>
    %171 = arith.divf %169, %170 : vector<8x128xf32>
    %172 = arith.select %7, %166, %171 : vector<8x128xi1>, vector<8x128xf32>
    %173 = vector.extract_strided_slice %172 {offsets = [0, 0], sizes = [8, 32], strides = [1, 1]} : vector<8x128xf32> to vector<8x32xf32>
    %174 = vector.extract_strided_slice %172 {offsets = [0, 32], sizes = [8, 32], strides = [1, 1]} : vector<8x128xf32> to vector<8x32xf32>
    %175 = vector.extract_strided_slice %172 {offsets = [0, 64], sizes = [8, 32], strides = [1, 1]} : vector<8x128xf32> to vector<8x32xf32>
    %176 = vector.extract_strided_slice %172 {offsets = [0, 96], sizes = [8, 32], strides = [1, 1]} : vector<8x128xf32> to vector<8x32xf32>
    %177 = arith.mulf %174, %148 : vector<8x32xf32>
    %178 = arith.mulf %173, %175 : vector<8x32xf32>
    %179 = arith.addf %177, %178 : vector<8x32xf32>
    %180 = math.tanh %179 : vector<8x32xf32>
    %181 = arith.mulf %176, %180 : vector<8x32xf32>
    %182 = vector.broadcast %159 : i32 to vector<8x1xi32>
    %183 = arith.cmpi slt, %182, %1 : vector<8x1xi32>
    %184 = vector.shape_cast %183 : vector<8x1xi1> to vector<8x1xi1>
    %185 = vector.broadcast %184 : vector<8x1xi1> to vector<8x32xi1>
    %186 = arith.select %185, %181, %145 : vector<8x32xi1>, vector<8x32xf32>
    %187 = vector.shape_cast %183 : vector<8x1xi1> to vector<8x1xi1>
    %188 = vector.broadcast %187 : vector<8x1xi1> to vector<8x32xi1>
    %189 = arith.select %188, %179, %148 : vector<8x32xi1>, vector<8x32xf32>
    %cst_36 = arith.constant 0.000000e+00 : f32
    %190 = vector.shape_cast %183 : vector<8x1xi1> to vector<8x1xi1>
    %191 = vector.broadcast %190 : vector<8x1xi1> to vector<8x32xi1>
    %192 = vector.broadcast %cst_36 : f32 to vector<8x32xf32>
    %193 = arith.select %191, %181, %192 : vector<8x32xi1>, vector<8x32xf32>
    %c4_i32_37 = arith.constant 4 : i32
    %194 = arith.muli %c1_i32_29, %c4_i32_37 : i32
    %c1_i32_38 = arith.constant 1 : i32
    %195 = arith.addi %194, %c1_i32_38 : i32
    %196 = arith.index_cast %195 : i32 to index
    %c0_39 = arith.constant 0 : index
    %c0_40 = arith.constant 0 : index
    %197 = vector.load %arg1[%196, %c0_39, %c0_40] : memref<12x8x128xf32, #tpu.memory_space<vmem>>, vector<1x8x128xf32>
    %198 = vector.shape_cast %197 : vector<1x8x128xf32> to vector<8x128xf32>
    %199 = arith.truncf %186 : vector<8x32xf32> to vector<8x32xbf16>
    %cst_41 = arith.constant dense<0.000000e+00> : vector<8x128xf32>
    %200 = tpu.matmul %199, %0, %cst_41 {dimension_numbers = #tpu.dot_dimension_numbers<[1], [0], [0], [1], [0, 0, 1, 1], [], []>} : vector<8x32xbf16>, vector<32x128xbf16>, vector<8x128xf32> -> vector<8x128xf32>
    %201 = arith.addf %198, %200 : vector<8x128xf32>
    %202 = math.tanh %201 : vector<8x128xf32>
    %203 = arith.negf %201 : vector<8x128xf32>
    %204 = math.exp %203 : vector<8x128xf32>
    %cst_42 = arith.constant 1.000000e+00 : f32
    %205 = vector.broadcast %cst_42 : f32 to vector<8x128xf32>
    %206 = arith.addf %205, %204 : vector<8x128xf32>
    %207 = arith.divf %205, %206 : vector<8x128xf32>
    %208 = arith.select %7, %202, %207 : vector<8x128xi1>, vector<8x128xf32>
    %209 = vector.extract_strided_slice %208 {offsets = [0, 0], sizes = [8, 32], strides = [1, 1]} : vector<8x128xf32> to vector<8x32xf32>
    %210 = vector.extract_strided_slice %208 {offsets = [0, 32], sizes = [8, 32], strides = [1, 1]} : vector<8x128xf32> to vector<8x32xf32>
    %211 = vector.extract_strided_slice %208 {offsets = [0, 64], sizes = [8, 32], strides = [1, 1]} : vector<8x128xf32> to vector<8x32xf32>
    %212 = vector.extract_strided_slice %208 {offsets = [0, 96], sizes = [8, 32], strides = [1, 1]} : vector<8x128xf32> to vector<8x32xf32>
    %213 = arith.mulf %210, %189 : vector<8x32xf32>
    %214 = arith.mulf %209, %211 : vector<8x32xf32>
    %215 = arith.addf %213, %214 : vector<8x32xf32>
    %216 = math.tanh %215 : vector<8x32xf32>
    %217 = arith.mulf %212, %216 : vector<8x32xf32>
    %218 = vector.broadcast %195 : i32 to vector<8x1xi32>
    %219 = arith.cmpi slt, %218, %1 : vector<8x1xi32>
    %220 = vector.shape_cast %219 : vector<8x1xi1> to vector<8x1xi1>
    %221 = vector.broadcast %220 : vector<8x1xi1> to vector<8x32xi1>
    %222 = arith.select %221, %217, %186 : vector<8x32xi1>, vector<8x32xf32>
    %223 = vector.shape_cast %219 : vector<8x1xi1> to vector<8x1xi1>
    %224 = vector.broadcast %223 : vector<8x1xi1> to vector<8x32xi1>
    %225 = arith.select %224, %215, %189 : vector<8x32xi1>, vector<8x32xf32>
    %cst_43 = arith.constant 0.000000e+00 : f32
    %226 = vector.shape_cast %219 : vector<8x1xi1> to vector<8x1xi1>
    %227 = vector.broadcast %226 : vector<8x1xi1> to vector<8x32xi1>
    %228 = vector.broadcast %cst_43 : f32 to vector<8x32xf32>
    %229 = arith.select %227, %217, %228 : vector<8x32xi1>, vector<8x32xf32>
    %c4_i32_44 = arith.constant 4 : i32
    %230 = arith.muli %c1_i32_29, %c4_i32_44 : i32
    %c2_i32_45 = arith.constant 2 : i32
    %231 = arith.addi %230, %c2_i32_45 : i32
    %232 = arith.index_cast %231 : i32 to index
    %c0_46 = arith.constant 0 : index
    %c0_47 = arith.constant 0 : index
    %233 = vector.load %arg1[%232, %c0_46, %c0_47] : memref<12x8x128xf32, #tpu.memory_space<vmem>>, vector<1x8x128xf32>
    %234 = vector.shape_cast %233 : vector<1x8x128xf32> to vector<8x128xf32>
    %235 = arith.truncf %222 : vector<8x32xf32> to vector<8x32xbf16>
    %cst_48 = arith.constant dense<0.000000e+00> : vector<8x128xf32>
    %236 = tpu.matmul %235, %0, %cst_48 {dimension_numbers = #tpu.dot_dimension_numbers<[1], [0], [0], [1], [0, 0, 1, 1], [], []>} : vector<8x32xbf16>, vector<32x128xbf16>, vector<8x128xf32> -> vector<8x128xf32>
    %237 = arith.addf %234, %236 : vector<8x128xf32>
    %238 = math.tanh %237 : vector<8x128xf32>
    %239 = arith.negf %237 : vector<8x128xf32>
    %240 = math.exp %239 : vector<8x128xf32>
    %cst_49 = arith.constant 1.000000e+00 : f32
    %241 = vector.broadcast %cst_49 : f32 to vector<8x128xf32>
    %242 = arith.addf %241, %240 : vector<8x128xf32>
    %243 = arith.divf %241, %242 : vector<8x128xf32>
    %244 = arith.select %7, %238, %243 : vector<8x128xi1>, vector<8x128xf32>
    %245 = vector.extract_strided_slice %244 {offsets = [0, 0], sizes = [8, 32], strides = [1, 1]} : vector<8x128xf32> to vector<8x32xf32>
    %246 = vector.extract_strided_slice %244 {offsets = [0, 32], sizes = [8, 32], strides = [1, 1]} : vector<8x128xf32> to vector<8x32xf32>
    %247 = vector.extract_strided_slice %244 {offsets = [0, 64], sizes = [8, 32], strides = [1, 1]} : vector<8x128xf32> to vector<8x32xf32>
    %248 = vector.extract_strided_slice %244 {offsets = [0, 96], sizes = [8, 32], strides = [1, 1]} : vector<8x128xf32> to vector<8x32xf32>
    %249 = arith.mulf %246, %225 : vector<8x32xf32>
    %250 = arith.mulf %245, %247 : vector<8x32xf32>
    %251 = arith.addf %249, %250 : vector<8x32xf32>
    %252 = math.tanh %251 : vector<8x32xf32>
    %253 = arith.mulf %248, %252 : vector<8x32xf32>
    %254 = vector.broadcast %231 : i32 to vector<8x1xi32>
    %255 = arith.cmpi slt, %254, %1 : vector<8x1xi32>
    %256 = vector.shape_cast %255 : vector<8x1xi1> to vector<8x1xi1>
    %257 = vector.broadcast %256 : vector<8x1xi1> to vector<8x32xi1>
    %258 = arith.select %257, %253, %222 : vector<8x32xi1>, vector<8x32xf32>
    %259 = vector.shape_cast %255 : vector<8x1xi1> to vector<8x1xi1>
    %260 = vector.broadcast %259 : vector<8x1xi1> to vector<8x32xi1>
    %261 = arith.select %260, %251, %225 : vector<8x32xi1>, vector<8x32xf32>
    %cst_50 = arith.constant 0.000000e+00 : f32
    %262 = vector.shape_cast %255 : vector<8x1xi1> to vector<8x1xi1>
    %263 = vector.broadcast %262 : vector<8x1xi1> to vector<8x32xi1>
    %264 = vector.broadcast %cst_50 : f32 to vector<8x32xf32>
    %265 = arith.select %263, %253, %264 : vector<8x32xi1>, vector<8x32xf32>
    %c4_i32_51 = arith.constant 4 : i32
    %266 = arith.muli %c1_i32_29, %c4_i32_51 : i32
    %c3_i32_52 = arith.constant 3 : i32
    %267 = arith.addi %266, %c3_i32_52 : i32
    %268 = arith.index_cast %267 : i32 to index
    %c0_53 = arith.constant 0 : index
    %c0_54 = arith.constant 0 : index
    %269 = vector.load %arg1[%268, %c0_53, %c0_54] : memref<12x8x128xf32, #tpu.memory_space<vmem>>, vector<1x8x128xf32>
    %270 = vector.shape_cast %269 : vector<1x8x128xf32> to vector<8x128xf32>
    %271 = arith.truncf %258 : vector<8x32xf32> to vector<8x32xbf16>
    %cst_55 = arith.constant dense<0.000000e+00> : vector<8x128xf32>
    %272 = tpu.matmul %271, %0, %cst_55 {dimension_numbers = #tpu.dot_dimension_numbers<[1], [0], [0], [1], [0, 0, 1, 1], [], []>} : vector<8x32xbf16>, vector<32x128xbf16>, vector<8x128xf32> -> vector<8x128xf32>
    %273 = arith.addf %270, %272 : vector<8x128xf32>
    %274 = math.tanh %273 : vector<8x128xf32>
    %275 = arith.negf %273 : vector<8x128xf32>
    %276 = math.exp %275 : vector<8x128xf32>
    %cst_56 = arith.constant 1.000000e+00 : f32
    %277 = vector.broadcast %cst_56 : f32 to vector<8x128xf32>
    %278 = arith.addf %277, %276 : vector<8x128xf32>
    %279 = arith.divf %277, %278 : vector<8x128xf32>
    %280 = arith.select %7, %274, %279 : vector<8x128xi1>, vector<8x128xf32>
    %281 = vector.extract_strided_slice %280 {offsets = [0, 0], sizes = [8, 32], strides = [1, 1]} : vector<8x128xf32> to vector<8x32xf32>
    %282 = vector.extract_strided_slice %280 {offsets = [0, 32], sizes = [8, 32], strides = [1, 1]} : vector<8x128xf32> to vector<8x32xf32>
    %283 = vector.extract_strided_slice %280 {offsets = [0, 64], sizes = [8, 32], strides = [1, 1]} : vector<8x128xf32> to vector<8x32xf32>
    %284 = vector.extract_strided_slice %280 {offsets = [0, 96], sizes = [8, 32], strides = [1, 1]} : vector<8x128xf32> to vector<8x32xf32>
    %285 = arith.mulf %282, %261 : vector<8x32xf32>
    %286 = arith.mulf %281, %283 : vector<8x32xf32>
    %287 = arith.addf %285, %286 : vector<8x32xf32>
    %288 = math.tanh %287 : vector<8x32xf32>
    %289 = arith.mulf %284, %288 : vector<8x32xf32>
    %290 = vector.broadcast %267 : i32 to vector<8x1xi32>
    %291 = arith.cmpi slt, %290, %1 : vector<8x1xi32>
    %292 = vector.shape_cast %291 : vector<8x1xi1> to vector<8x1xi1>
    %293 = vector.broadcast %292 : vector<8x1xi1> to vector<8x32xi1>
    %294 = arith.select %293, %289, %258 : vector<8x32xi1>, vector<8x32xf32>
    %295 = vector.shape_cast %291 : vector<8x1xi1> to vector<8x1xi1>
    %296 = vector.broadcast %295 : vector<8x1xi1> to vector<8x32xi1>
    %297 = arith.select %296, %287, %261 : vector<8x32xi1>, vector<8x32xf32>
    %cst_57 = arith.constant 0.000000e+00 : f32
    %298 = vector.shape_cast %291 : vector<8x1xi1> to vector<8x1xi1>
    %299 = vector.broadcast %298 : vector<8x1xi1> to vector<8x32xi1>
    %300 = vector.broadcast %cst_57 : f32 to vector<8x32xf32>
    %301 = arith.select %299, %289, %300 : vector<8x32xi1>, vector<8x32xf32>
    %302 = tpu.concatenate %193, %229, %265, %301 in 1 : vector<8x32xf32>, vector<8x32xf32>, vector<8x32xf32>, vector<8x32xf32> -> vector<8x128xf32>
    %303 = arith.index_cast %c1_i32_29 : i32 to index
    %c0_58 = arith.constant 0 : index
    %c0_59 = arith.constant 0 : index
    %304 = vector.load %arg3[%303, %c0_58, %c0_59] : memref<3x8x128xf32, #tpu.memory_space<vmem>>, vector<1x8x128xf32>
    %305 = vector.shape_cast %304 : vector<1x8x128xf32> to vector<8x128xf32>
    %306 = vector.shape_cast %302 : vector<8x128xf32> to vector<1x8x128xf32>
    tpu.vector_store %arg3[%303, %c0_58, %c0_59], %306 {strides = array<i32>} : memref<3x8x128xf32, #tpu.memory_space<vmem>>, vector<1x8x128xf32>,
    %c2_i32_60 = arith.constant 2 : i32
    %c4_i32_61 = arith.constant 4 : i32
    %307 = arith.muli %c2_i32_60, %c4_i32_61 : i32
    %c0_i32_62 = arith.constant 0 : i32
    %308 = arith.addi %307, %c0_i32_62 : i32
    %309 = arith.index_cast %308 : i32 to index
    %c0_63 = arith.constant 0 : index
    %c0_64 = arith.constant 0 : index
    %310 = vector.load %arg1[%309, %c0_63, %c0_64] : memref<12x8x128xf32, #tpu.memory_space<vmem>>, vector<1x8x128xf32>
    %311 = vector.shape_cast %310 : vector<1x8x128xf32> to vector<8x128xf32>
    %312 = arith.truncf %294 : vector<8x32xf32> to vector<8x32xbf16>
    %cst_65 = arith.constant dense<0.000000e+00> : vector<8x128xf32>
    %313 = tpu.matmul %312, %0, %cst_65 {dimension_numbers = #tpu.dot_dimension_numbers<[1], [0], [0], [1], [0, 0, 1, 1], [], []>} : vector<8x32xbf16>, vector<32x128xbf16>, vector<8x128xf32> -> vector<8x128xf32>
    %314 = arith.addf %311, %313 : vector<8x128xf32>
    %315 = math.tanh %314 : vector<8x128xf32>
    %316 = arith.negf %314 : vector<8x128xf32>
    %317 = math.exp %316 : vector<8x128xf32>
    %cst_66 = arith.constant 1.000000e+00 : f32
    %318 = vector.broadcast %cst_66 : f32 to vector<8x128xf32>
    %319 = arith.addf %318, %317 : vector<8x128xf32>
    %320 = arith.divf %318, %319 : vector<8x128xf32>
    %321 = arith.select %7, %315, %320 : vector<8x128xi1>, vector<8x128xf32>
    %322 = vector.extract_strided_slice %321 {offsets = [0, 0], sizes = [8, 32], strides = [1, 1]} : vector<8x128xf32> to vector<8x32xf32>
    %323 = vector.extract_strided_slice %321 {offsets = [0, 32], sizes = [8, 32], strides = [1, 1]} : vector<8x128xf32> to vector<8x32xf32>
    %324 = vector.extract_strided_slice %321 {offsets = [0, 64], sizes = [8, 32], strides = [1, 1]} : vector<8x128xf32> to vector<8x32xf32>
    %325 = vector.extract_strided_slice %321 {offsets = [0, 96], sizes = [8, 32], strides = [1, 1]} : vector<8x128xf32> to vector<8x32xf32>
    %326 = arith.mulf %323, %297 : vector<8x32xf32>
    %327 = arith.mulf %322, %324 : vector<8x32xf32>
    %328 = arith.addf %326, %327 : vector<8x32xf32>
    %329 = math.tanh %328 : vector<8x32xf32>
    %330 = arith.mulf %325, %329 : vector<8x32xf32>
    %331 = vector.broadcast %308 : i32 to vector<8x1xi32>
    %332 = arith.cmpi slt, %331, %1 : vector<8x1xi32>
    %333 = vector.shape_cast %332 : vector<8x1xi1> to vector<8x1xi1>
    %334 = vector.broadcast %333 : vector<8x1xi1> to vector<8x32xi1>
    %335 = arith.select %334, %330, %294 : vector<8x32xi1>, vector<8x32xf32>
    %336 = vector.shape_cast %332 : vector<8x1xi1> to vector<8x1xi1>
    %337 = vector.broadcast %336 : vector<8x1xi1> to vector<8x32xi1>
    %338 = arith.select %337, %328, %297 : vector<8x32xi1>, vector<8x32xf32>
    %cst_67 = arith.constant 0.000000e+00 : f32
    %339 = vector.shape_cast %332 : vector<8x1xi1> to vector<8x1xi1>
    %340 = vector.broadcast %339 : vector<8x1xi1> to vector<8x32xi1>
    %341 = vector.broadcast %cst_67 : f32 to vector<8x32xf32>
    %342 = arith.select %340, %330, %341 : vector<8x32xi1>, vector<8x32xf32>
    %c4_i32_68 = arith.constant 4 : i32
    %343 = arith.muli %c2_i32_60, %c4_i32_68 : i32
    %c1_i32_69 = arith.constant 1 : i32
    %344 = arith.addi %343, %c1_i32_69 : i32
    %345 = arith.index_cast %344 : i32 to index
    %c0_70 = arith.constant 0 : index
    %c0_71 = arith.constant 0 : index
    %346 = vector.load %arg1[%345, %c0_70, %c0_71] : memref<12x8x128xf32, #tpu.memory_space<vmem>>, vector<1x8x128xf32>
    %347 = vector.shape_cast %346 : vector<1x8x128xf32> to vector<8x128xf32>
    %348 = arith.truncf %335 : vector<8x32xf32> to vector<8x32xbf16>
    %cst_72 = arith.constant dense<0.000000e+00> : vector<8x128xf32>
    %349 = tpu.matmul %348, %0, %cst_72 {dimension_numbers = #tpu.dot_dimension_numbers<[1], [0], [0], [1], [0, 0, 1, 1], [], []>} : vector<8x32xbf16>, vector<32x128xbf16>, vector<8x128xf32> -> vector<8x128xf32>
    %350 = arith.addf %347, %349 : vector<8x128xf32>
    %351 = math.tanh %350 : vector<8x128xf32>
    %352 = arith.negf %350 : vector<8x128xf32>
    %353 = math.exp %352 : vector<8x128xf32>
    %cst_73 = arith.constant 1.000000e+00 : f32
    %354 = vector.broadcast %cst_73 : f32 to vector<8x128xf32>
    %355 = arith.addf %354, %353 : vector<8x128xf32>
    %356 = arith.divf %354, %355 : vector<8x128xf32>
    %357 = arith.select %7, %351, %356 : vector<8x128xi1>, vector<8x128xf32>
    %358 = vector.extract_strided_slice %357 {offsets = [0, 0], sizes = [8, 32], strides = [1, 1]} : vector<8x128xf32> to vector<8x32xf32>
    %359 = vector.extract_strided_slice %357 {offsets = [0, 32], sizes = [8, 32], strides = [1, 1]} : vector<8x128xf32> to vector<8x32xf32>
    %360 = vector.extract_strided_slice %357 {offsets = [0, 64], sizes = [8, 32], strides = [1, 1]} : vector<8x128xf32> to vector<8x32xf32>
    %361 = vector.extract_strided_slice %357 {offsets = [0, 96], sizes = [8, 32], strides = [1, 1]} : vector<8x128xf32> to vector<8x32xf32>
    %362 = arith.mulf %359, %338 : vector<8x32xf32>
    %363 = arith.mulf %358, %360 : vector<8x32xf32>
    %364 = arith.addf %362, %363 : vector<8x32xf32>
    %365 = math.tanh %364 : vector<8x32xf32>
    %366 = arith.mulf %361, %365 : vector<8x32xf32>
    %367 = vector.broadcast %344 : i32 to vector<8x1xi32>
    %368 = arith.cmpi slt, %367, %1 : vector<8x1xi32>
    %369 = vector.shape_cast %368 : vector<8x1xi1> to vector<8x1xi1>
    %370 = vector.broadcast %369 : vector<8x1xi1> to vector<8x32xi1>
    %371 = arith.select %370, %366, %335 : vector<8x32xi1>, vector<8x32xf32>
    %372 = vector.shape_cast %368 : vector<8x1xi1> to vector<8x1xi1>
    %373 = vector.broadcast %372 : vector<8x1xi1> to vector<8x32xi1>
    %374 = arith.select %373, %364, %338 : vector<8x32xi1>, vector<8x32xf32>
    %cst_74 = arith.constant 0.000000e+00 : f32
    %375 = vector.shape_cast %368 : vector<8x1xi1> to vector<8x1xi1>
    %376 = vector.broadcast %375 : vector<8x1xi1> to vector<8x32xi1>
    %377 = vector.broadcast %cst_74 : f32 to vector<8x32xf32>
    %378 = arith.select %376, %366, %377 : vector<8x32xi1>, vector<8x32xf32>
    %c4_i32_75 = arith.constant 4 : i32
    %379 = arith.muli %c2_i32_60, %c4_i32_75 : i32
    %c2_i32_76 = arith.constant 2 : i32
    %380 = arith.addi %379, %c2_i32_76 : i32
    %381 = arith.index_cast %380 : i32 to index
    %c0_77 = arith.constant 0 : index
    %c0_78 = arith.constant 0 : index
    %382 = vector.load %arg1[%381, %c0_77, %c0_78] : memref<12x8x128xf32, #tpu.memory_space<vmem>>, vector<1x8x128xf32>
    %383 = vector.shape_cast %382 : vector<1x8x128xf32> to vector<8x128xf32>
    %384 = arith.truncf %371 : vector<8x32xf32> to vector<8x32xbf16>
    %cst_79 = arith.constant dense<0.000000e+00> : vector<8x128xf32>
    %385 = tpu.matmul %384, %0, %cst_79 {dimension_numbers = #tpu.dot_dimension_numbers<[1], [0], [0], [1], [0, 0, 1, 1], [], []>} : vector<8x32xbf16>, vector<32x128xbf16>, vector<8x128xf32> -> vector<8x128xf32>
    %386 = arith.addf %383, %385 : vector<8x128xf32>
    %387 = math.tanh %386 : vector<8x128xf32>
    %388 = arith.negf %386 : vector<8x128xf32>
    %389 = math.exp %388 : vector<8x128xf32>
    %cst_80 = arith.constant 1.000000e+00 : f32
    %390 = vector.broadcast %cst_80 : f32 to vector<8x128xf32>
    %391 = arith.addf %390, %389 : vector<8x128xf32>
    %392 = arith.divf %390, %391 : vector<8x128xf32>
    %393 = arith.select %7, %387, %392 : vector<8x128xi1>, vector<8x128xf32>
    %394 = vector.extract_strided_slice %393 {offsets = [0, 0], sizes = [8, 32], strides = [1, 1]} : vector<8x128xf32> to vector<8x32xf32>
    %395 = vector.extract_strided_slice %393 {offsets = [0, 32], sizes = [8, 32], strides = [1, 1]} : vector<8x128xf32> to vector<8x32xf32>
    %396 = vector.extract_strided_slice %393 {offsets = [0, 64], sizes = [8, 32], strides = [1, 1]} : vector<8x128xf32> to vector<8x32xf32>
    %397 = vector.extract_strided_slice %393 {offsets = [0, 96], sizes = [8, 32], strides = [1, 1]} : vector<8x128xf32> to vector<8x32xf32>
    %398 = arith.mulf %395, %374 : vector<8x32xf32>
    %399 = arith.mulf %394, %396 : vector<8x32xf32>
    %400 = arith.addf %398, %399 : vector<8x32xf32>
    %401 = math.tanh %400 : vector<8x32xf32>
    %402 = arith.mulf %397, %401 : vector<8x32xf32>
    %403 = vector.broadcast %380 : i32 to vector<8x1xi32>
    %404 = arith.cmpi slt, %403, %1 : vector<8x1xi32>
    %405 = vector.shape_cast %404 : vector<8x1xi1> to vector<8x1xi1>
    %406 = vector.broadcast %405 : vector<8x1xi1> to vector<8x32xi1>
    %407 = arith.select %406, %402, %371 : vector<8x32xi1>, vector<8x32xf32>
    %408 = vector.shape_cast %404 : vector<8x1xi1> to vector<8x1xi1>
    %409 = vector.broadcast %408 : vector<8x1xi1> to vector<8x32xi1>
    %410 = arith.select %409, %400, %374 : vector<8x32xi1>, vector<8x32xf32>
    %cst_81 = arith.constant 0.000000e+00 : f32
    %411 = vector.shape_cast %404 : vector<8x1xi1> to vector<8x1xi1>
    %412 = vector.broadcast %411 : vector<8x1xi1> to vector<8x32xi1>
    %413 = vector.broadcast %cst_81 : f32 to vector<8x32xf32>
    %414 = arith.select %412, %402, %413 : vector<8x32xi1>, vector<8x32xf32>
    %c4_i32_82 = arith.constant 4 : i32
    %415 = arith.muli %c2_i32_60, %c4_i32_82 : i32
    %c3_i32_83 = arith.constant 3 : i32
    %416 = arith.addi %415, %c3_i32_83 : i32
    %417 = arith.index_cast %416 : i32 to index
    %c0_84 = arith.constant 0 : index
    %c0_85 = arith.constant 0 : index
    %418 = vector.load %arg1[%417, %c0_84, %c0_85] : memref<12x8x128xf32, #tpu.memory_space<vmem>>, vector<1x8x128xf32>
    %419 = vector.shape_cast %418 : vector<1x8x128xf32> to vector<8x128xf32>
    %420 = arith.truncf %407 : vector<8x32xf32> to vector<8x32xbf16>
    %cst_86 = arith.constant dense<0.000000e+00> : vector<8x128xf32>
    %421 = tpu.matmul %420, %0, %cst_86 {dimension_numbers = #tpu.dot_dimension_numbers<[1], [0], [0], [1], [0, 0, 1, 1], [], []>} : vector<8x32xbf16>, vector<32x128xbf16>, vector<8x128xf32> -> vector<8x128xf32>
    %422 = arith.addf %419, %421 : vector<8x128xf32>
    %423 = math.tanh %422 : vector<8x128xf32>
    %424 = arith.negf %422 : vector<8x128xf32>
    %425 = math.exp %424 : vector<8x128xf32>
    %cst_87 = arith.constant 1.000000e+00 : f32
    %426 = vector.broadcast %cst_87 : f32 to vector<8x128xf32>
    %427 = arith.addf %426, %425 : vector<8x128xf32>
    %428 = arith.divf %426, %427 : vector<8x128xf32>
    %429 = arith.select %7, %423, %428 : vector<8x128xi1>, vector<8x128xf32>
    %430 = vector.extract_strided_slice %429 {offsets = [0, 0], sizes = [8, 32], strides = [1, 1]} : vector<8x128xf32> to vector<8x32xf32>
    %431 = vector.extract_strided_slice %429 {offsets = [0, 32], sizes = [8, 32], strides = [1, 1]} : vector<8x128xf32> to vector<8x32xf32>
    %432 = vector.extract_strided_slice %429 {offsets = [0, 64], sizes = [8, 32], strides = [1, 1]} : vector<8x128xf32> to vector<8x32xf32>
    %433 = vector.extract_strided_slice %429 {offsets = [0, 96], sizes = [8, 32], strides = [1, 1]} : vector<8x128xf32> to vector<8x32xf32>
    %434 = arith.mulf %431, %410 : vector<8x32xf32>
    %435 = arith.mulf %430, %432 : vector<8x32xf32>
    %436 = arith.addf %434, %435 : vector<8x32xf32>
    %437 = math.tanh %436 : vector<8x32xf32>
    %438 = arith.mulf %433, %437 : vector<8x32xf32>
    %439 = vector.broadcast %416 : i32 to vector<8x1xi32>
    %440 = arith.cmpi slt, %439, %1 : vector<8x1xi32>
    %441 = vector.shape_cast %440 : vector<8x1xi1> to vector<8x1xi1>
    %442 = vector.broadcast %441 : vector<8x1xi1> to vector<8x32xi1>
    %443 = arith.select %442, %438, %407 : vector<8x32xi1>, vector<8x32xf32>
    %444 = vector.shape_cast %440 : vector<8x1xi1> to vector<8x1xi1>
    %445 = vector.broadcast %444 : vector<8x1xi1> to vector<8x32xi1>
    %446 = arith.select %445, %436, %410 : vector<8x32xi1>, vector<8x32xf32>
    %cst_88 = arith.constant 0.000000e+00 : f32
    %447 = vector.shape_cast %440 : vector<8x1xi1> to vector<8x1xi1>
    %448 = vector.broadcast %447 : vector<8x1xi1> to vector<8x32xi1>
    %449 = vector.broadcast %cst_88 : f32 to vector<8x32xf32>
    %450 = arith.select %448, %438, %449 : vector<8x32xi1>, vector<8x32xf32>
    %451 = tpu.concatenate %342, %378, %414, %450 in 1 : vector<8x32xf32>, vector<8x32xf32>, vector<8x32xf32>, vector<8x32xf32> -> vector<8x128xf32>
    %452 = arith.index_cast %c2_i32_60 : i32 to index
    %c0_89 = arith.constant 0 : index
    %c0_90 = arith.constant 0 : index
    %453 = vector.load %arg3[%452, %c0_89, %c0_90] : memref<3x8x128xf32, #tpu.memory_space<vmem>>, vector<1x8x128xf32>
    %454 = vector.shape_cast %453 : vector<1x8x128xf32> to vector<8x128xf32>
    %455 = vector.shape_cast %451 : vector<8x128xf32> to vector<1x8x128xf32>
    tpu.vector_store %arg3[%452, %c0_89, %c0_90], %455 {strides = array<i32>} : memref<3x8x128xf32, #tpu.memory_space<vmem>>, vector<1x8x128xf32>,
    %c3_i32_91 = arith.constant 3 : i32
    return
  }
}

</mosaic_0001>

<llo_original>
// kernel: tpu_custom_call.1
$region0: #{tpu_custom_call.1}
  #allocation0 [shape = 'u32[]', space=smem, size = 0x4, offset = 0x4, fixed_abs, tag = 'smem constant byte address 0x4 - core index']
  #allocation1 [shape = 'u32[144,128]{1,0:T(1,128)}', space=vmem, size = 0x12000, scoped, tag = 'internal scratch']
  %s0 = inlined_call_operand.vmem [shape: s32[8,1], index: 0, kind: input, shape index: {}]
  %s1 = inlined_call_operand.hbm [shape: f32[12,8,128], index: 1, kind: input, shape index: {}]
  %s2 = inlined_call_operand.hbm [shape: bf16[32,128], index: 2, kind: input, shape index: {}]
  %s3 = inlined_call_operand.hbm [shape: f32[3,8,128], index: 3, kind: output, shape index: {}]
  %s4 = sld [smem:[#allocation0]]
  $region30: #{tpu_custom_call.1} parent=0
    _
  %s6 = ssub.s32 1, %s4
  %s7 = scalar_select 0, %s6, %s4
  $region1: #{tpu_custom_call.1} parent=0
    #allocation2 [shape = 'u8[49152]{0}', space=vmem, size = 0xc000, scoped, tag = 'input window, operand 1, single buffered']
    #allocation3 [shape = 's32[1]{0}', space=sflag, size = 0x4, scoped, tag = 'scoped memory for tpu_custom_call.1']
    #allocation4 [shape = 's32[1]{0}', space=sflag, size = 0x4, scoped, tag = 'scoped memory for tpu_custom_call.1']
    #allocation5 [shape = 'u8[8192]{0}', space=vmem, size = 0x2000, scoped, tag = 'input window, operand 2, single buffered']
    #allocation6 [shape = 's32[1]{0}', space=sflag, size = 0x4, scoped, tag = 'scoped memory for tpu_custom_call.1']
    #allocation7 [shape = 'u8[12288]{0}', space=vmem, size = 0x3000, scoped, tag = 'output window, operand 0, single buffered']
    %8 = vsyncpa [#allocation3], 0
    %9 = vsyncpa [#allocation6], 0
    %10 = vsyncpa [#allocation4], 0
    // Predicated region
    $region2: #{tpu_custom_call.1} parent=1 // pred_check
      _
    $region3: #{tpu_custom_call.1} parent=1 // pred_check_branch
      %12 = sbr.rel (0) target = $region5
    $region4: #{tpu_custom_call.1} parent=1 // pred_region
      _
    $region5: #{tpu_custom_call.1} parent=1 // pred_fallthru
      _
    // Predicated region
    $region6: #{tpu_custom_call.1} parent=1 // pred_check
      _
    $region7: #{tpu_custom_call.1} parent=1 // pred_check_branch
      %14 = sbr.rel (0) target = $region9
    $region8: #{tpu_custom_call.1} parent=1 // pred_region
      %s16 = ssub.s32 1536, 1536
      %17 = vsyncadd [#allocation3], %s16
      %s18 = sshll.u32 [#allocation2], 4
      %s19 = int_to_ptr.vmem [resolvable:$true] %s18
      %24 = dma.hbm_to_vmem [thread:$0]  %s1, 1536, %s19, [#allocation3], 128, 128, 8
    $region9: #{tpu_custom_call.1} parent=1 // pred_fallthru
      _
    // Predicated region
    $region10: #{tpu_custom_call.1} parent=1 // pred_check
      _
    $region11: #{tpu_custom_call.1} parent=1 // pred_check_branch
      %26 = sbr.rel (0) target = $region13
    $region12: #{tpu_custom_call.1} parent=1 // pred_region
      %s28 = ssub.s32 256, 256
      %29 = vsyncadd [#allocation6], %s28
      %s30 = sshll.u32 [#allocation5], 4
      %s31 = int_to_ptr.vmem [resolvable:$true] %s30
      %36 = dma.hbm_to_vmem [thread:$0]  %s2, 256, %s31, [#allocation6], 64, 64, 4
    $region13: #{tpu_custom_call.1} parent=1 // pred_fallthru
      _
    // Predicated region
    $region14: #{tpu_custom_call.1} parent=1 // pred_check
      _
    $region15: #{tpu_custom_call.1} parent=1 // pred_check_branch
      %38 = sbr.rel (0) target = $region17
    $region16: #{tpu_custom_call.1} parent=1 // pred_region
      %39 = dma.done [#allocation3], 1536
    $region17: #{tpu_custom_call.1} parent=1 // pred_fallthru
      _
    // Predicated region
    $region18: #{tpu_custom_call.1} parent=1 // pred_check
      _
    $region19: #{tpu_custom_call.1} parent=1 // pred_check_branch
      %41 = sbr.rel (0) target = $region21
    $region20: #{tpu_custom_call.1} parent=1 // pred_region
      %42 = dma.done [#allocation6], 256
    $region21: #{tpu_custom_call.1} parent=1 // pred_fallthru
      _
    %v44 = vld [vmem:[#allocation5] sm:$0xf]
    %v45 = vld [vmem:[#allocation5 + $0x4] sm:$0xf]
    %v46 = vld [vmem:[#allocation5 + $0x8] sm:$0xf]
    %v47 = vld [vmem:[#allocation5 + $0xc] sm:$0xf]
    %v48 = vld [vmem:[%s0] sm:$0xff]
    %v49 = vlaneseq
    %v50 = vand.u32 %v49, 127
    %vm51 = vcmp.ge.s32.totalorder %v50, 64
    %vm52 = vcmp.lt.s32.totalorder %v50, 96
    %vm53 = vmand %vm51, %vm52
    %v54 = vld [vmem:[#allocation2] sm:$0xff]
    %v59 = vunpack.c.l.b16 %v44
    %v60 = vunpack.c.l.b16 %v45
    %v61 = vunpack.c.l.b16 %v46
    %v62 = vunpack.c.l.b16 %v47
    %v63 = vpack.c.b16 %v60, %v59
    %v64 = vpack.c.b16 %v62, %v61
    %vm67 = vcmask 261120
    %v69 = vsel %vm67, 0, 0
    %71 = vmatprep.subr.bf16.mxu0 0
    %72 = vmatpush1.bf16.msra.mxu0 0
    %73 = vmatprep.subr.bf16.mxu0 0
    %74 = vmatpush1.bf16.msra.mxu0 0
    %75 = vmatprep.subr.bf16.mxu0 0
    %76 = vmatpush1.bf16.msra.mxu0 0
    %77 = vmatprep.subr.bf16.mxu0 0
    %78 = vmatpush1.bf16.msra.mxu0 0
    %79 = vmatprep.subr.bf16.mxu0 0
    %80 = vmatpush1.bf16.msra.mxu0 0
    %81 = vmatprep.subr.bf16.mxu0 0
    %82 = vmatpush1.bf16.msra.mxu0 0
    %83 = vmatprep.subr.bf16.mxu0 0
    %84 = vmatpush1.bf16.msra.mxu0 %v64
    %85 = vmatprep.subr.bf16.mxu0 0
    %86 = vmatpush1.bf16.msra.mxu0 %v63
    %87 = vmatprep.subr.bf16.mxu0 0
    %88 = vmatpush2.bf16.msra.mxu0 0
    %89 = vmatprep.subr.bf16.mxu0 0
    %90 = vmatpush2.bf16.msra.mxu0 0
    %91 = vmatprep.subr.bf16.mxu0 0
    %92 = vmatpush2.bf16.msra.mxu0 0
    %93 = vmatprep.subr.bf16.mxu0 0
    %94 = vmatpush2.bf16.msra.mxu0 0
    %95 = vmatprep.subr.bf16.mxu0 0
    %96 = vmatpush2.bf16.msra.mxu0 0
    %97 = vmatprep.subr.bf16.mxu0 0
    %98 = vmatpush2.bf16.msra.mxu0 0
    %99 = vmatprep.subr.bf16.mxu0 0
    %100 = vmatpush2.bf16.msra.mxu0 0
    %101 = vmatprep.subr.bf16.mxu0 0
    %102 = vmatpush2.bf16.msra.mxu0 0
    %103 = vmatprep.mubr.bf16.mxu0 0
    %104 = vmatmul.mubr.bf16.gmra.mxu0 %v69
    %v105 = vpop.f32.mrf.mxu0
    %v106 = vadd.f32 0.0, %v105
    %v107 = vpop.f32.mrf.mxu0
    %v108 = vpop.f32.mrf.mxu0
    %v109 = vpop.f32.mrf.mxu0
    %110 = vdwg.mxu0
    %v111 = vadd.f32 %v54, %v106
    %v112 = vtanh.pop %v111
    %v113 = vxor.u32 %v111, 2147483648
    %v114 = vmul.f32 %v113, 1.442695
    %v115 = vpow.pop %v114
    %v116 = vadd.f32 %v115, 1.0
    %v117 = vrcp.pop %v116
    %v118 = vmul.f32 1.0, %v117
    %v119 = vsel %vm53, %v112, %v118
    %v120 = vmul.f32 %v119, 0.0
    %122 = vrot.lane.b32.xlu0 %v119, 64
    %v123 = vpop.permute.xlu0 %122
    %v125 = vmul.f32 %v119, %v123
    %127 = vrot.lane.b32.xlu0 %v125, 32
    %v128 = vpop.permute.xlu0 %127
    %v130 = vadd.f32 %v120, %v128
    %v131 = vtanh.pop %v130
    %133 = vrot.lane.b32.xlu0 %v131, 64
    %v134 = vpop.permute.xlu0 %133
    %v136 = vmul.f32 %v119, %v134
    %vm137 = vcmp.gt.s32.totalorder %v48, 0
    %v138 = vsel %vm137, 1, 0
    %139 = vset.pattern.permute.xlu0 0
    %140 = vperm.xlu0 %139, %v138
    %v141 = vpop.permute.xlu0 %140
    %vm142 = vcmp.eq.s32.totalorder %v141, 1
    %v143 = vsel %vm142, %v136, 0.0
    %v144 = vsel %vm142, %v130, 0.0
    %s145 = scalar_lea.vmem [#allocation2], 8
    %v146 = vld [vmem:[%s145] sm:$0xff]
    %v147 = vpack.c.bf16 %v143, %v143
    %149 = vrot.lane.b32.xlu0 %v147, 32
    %v150 = vpop.permute.xlu0 %149
    %v152 = vsel %vm67, %v150, 0
    %154 = vmatprep.subr.bf16.mxu0 0
    %155 = vmatpush1.bf16.msra.mxu0 0
    %156 = vmatprep.subr.bf16.mxu0 0
    %157 = vmatpush1.bf16.msra.mxu0 0
    %158 = vmatprep.subr.bf16.mxu0 0
    %159 = vmatpush1.bf16.msra.mxu0 0
    %160 = vmatprep.subr.bf16.mxu0 0
    %161 = vmatpush1.bf16.msra.mxu0 0
    %162 = vmatprep.subr.bf16.mxu0 0
    %163 = vmatpush1.bf16.msra.mxu0 0
    %164 = vmatprep.subr.bf16.mxu0 0
    %165 = vmatpush1.bf16.msra.mxu0 0
    %166 = vmatprep.subr.bf16.mxu0 0
    %167 = vmatpush1.bf16.msra.mxu0 %v64
    %168 = vmatprep.subr.bf16.mxu0 0
    %169 = vmatpush1.bf16.msra.mxu0 %v63
    %170 = vmatprep.subr.bf16.mxu0 0
    %171 = vmatpush2.bf16.msra.mxu0 0
    %172 = vmatprep.subr.bf16.mxu0 0
    %173 = vmatpush2.bf16.msra.mxu0 0
    %174 = vmatprep.subr.bf16.mxu0 0
    %175 = vmatpush2.bf16.msra.mxu0 0
    %176 = vmatprep.subr.bf16.mxu0 0
    %177 = vmatpush2.bf16.msra.mxu0 0
    %178 = vmatprep.subr.bf16.mxu0 0
    %179 = vmatpush2.bf16.msra.mxu0 0
    %180 = vmatprep.subr.bf16.mxu0 0
    %181 = vmatpush2.bf16.msra.mxu0 0
    %182 = vmatprep.subr.bf16.mxu0 0
    %183 = vmatpush2.bf16.msra.mxu0 0
    %184 = vmatprep.subr.bf16.mxu0 0
    %185 = vmatpush2.bf16.msra.mxu0 0
    %186 = vmatprep.mubr.bf16.mxu0 0
    %187 = vmatmul.mubr.bf16.gmra.mxu0 %v152
    %v188 = vpop.f32.mrf.mxu0
    %v189 = vadd.f32 0.0, %v188
    %v190 = vpop.f32.mrf.mxu0
    %v191 = vpop.f32.mrf.mxu0
    %v192 = vpop.f32.mrf.mxu0
    %193 = vdwg.mxu0
    %v194 = vadd.f32 %v146, %v189
    %v195 = vtanh.pop %v194
    %v196 = vxor.u32 %v194, 2147483648
    %v197 = vmul.f32 %v196, 1.442695
    %v198 = vpow.pop %v197
    %v199 = vadd.f32 %v198, 1.0
    %v200 = vrcp.pop %v199
    %v201 = vmul.f32 1.0, %v200
    %v202 = vsel %vm53, %v195, %v201
    %v203 = vmul.f32 %v202, %v144
    %205 = vrot.lane.b32.xlu0 %v202, 64
    %v206 = vpop.permute.xlu0 %205
    %v208 = vmul.f32 %v202, %v206
    %210 = vrot.lane.b32.xlu0 %v208, 32
    %v211 = vpop.permute.xlu0 %210
    %v213 = vadd.f32 %v203, %v211
    %v214 = vtanh.pop %v213
    %216 = vrot.lane.b32.xlu0 %v214, 64
    %v217 = vpop.permute.xlu0 %216
    %v219 = vmul.f32 %v202, %v217
    %vm220 = vcmp.gt.s32.totalorder %v48, 1
    %v221 = vsel %vm220, 1, 0
    %222 = vset.pattern.permute.xlu0 0
    %223 = vperm.xlu0 %222, %v221
    %v224 = vpop.permute.xlu0 %223
    %vm225 = vcmp.eq.s32.totalorder %v224, 1
    %v226 = vsel %vm225, %v219, %v143
    %v227 = vsel %vm225, %v213, %v144
    %v228 = vsel %vm225, %v219, 0.0
    %s229 = scalar_lea.vmem [#allocation2], 16
    %v230 = vld [vmem:[%s229] sm:$0xff]
    %v231 = vpack.c.bf16 %v226, %v226
    %233 = vrot.lane.b32.xlu0 %v231, 32
    %v234 = vpop.permute.xlu0 %233
    %v236 = vsel %vm67, %v234, 0
    %238 = vmatprep.subr.bf16.mxu0 0
    %239 = vmatpush1.bf16.msra.mxu0 0
    %240 = vmatprep.subr.bf16.mxu0 0
    %241 = vmatpush1.bf16.msra.mxu0 0
    %242 = vmatprep.subr.bf16.mxu0 0
    %243 = vmatpush1.bf16.msra.mxu0 0
    %244 = vmatprep.subr.bf16.mxu0 0
    %245 = vmatpush1.bf16.msra.mxu0 0
    %246 = vmatprep.subr.bf16.mxu0 0
    %247 = vmatpush1.bf16.msra.mxu0 0
    %248 = vmatprep.subr.bf16.mxu0 0
    %249 = vmatpush1.bf16.msra.mxu0 0
    %250 = vmatprep.subr.bf16.mxu0 0
    %251 = vmatpush1.bf16.msra.mxu0 %v64
    %252 = vmatprep.subr.bf16.mxu0 0
    %253 = vmatpush1.bf16.msra.mxu0 %v63
    %254 = vmatprep.subr.bf16.mxu0 0
    %255 = vmatpush2.bf16.msra.mxu0 0
    %256 = vmatprep.subr.bf16.mxu0 0
    %257 = vmatpush2.bf16.msra.mxu0 0
    %258 = vmatprep.subr.bf16.mxu0 0
    %259 = vmatpush2.bf16.msra.mxu0 0
    %260 = vmatprep.subr.bf16.mxu0 0
    %261 = vmatpush2.bf16.msra.mxu0 0
    %262 = vmatprep.subr.bf16.mxu0 0
    %263 = vmatpush2.bf16.msra.mxu0 0
    %264 = vmatprep.subr.bf16.mxu0 0
    %265 = vmatpush2.bf16.msra.mxu0 0
    %266 = vmatprep.subr.bf16.mxu0 0
    %267 = vmatpush2.bf16.msra.mxu0 0
    %268 = vmatprep.subr.bf16.mxu0 0
    %269 = vmatpush2.bf16.msra.mxu0 0
    %270 = vmatprep.mubr.bf16.mxu0 0
    %271 = vmatmul.mubr.bf16.gmra.mxu0 %v236
    %v272 = vpop.f32.mrf.mxu0
    %v273 = vadd.f32 0.0, %v272
    %v274 = vpop.f32.mrf.mxu0
    %v275 = vpop.f32.mrf.mxu0
    %v276 = vpop.f32.mrf.mxu0
    %277 = vdwg.mxu0
    %v278 = vadd.f32 %v230, %v273
    %v279 = vtanh.pop %v278
    %v280 = vxor.u32 %v278, 2147483648
    %v281 = vmul.f32 %v280, 1.442695
    %v282 = vpow.pop %v281
    %v283 = vadd.f32 %v282, 1.0
    %v284 = vrcp.pop %v283
    %v285 = vmul.f32 1.0, %v284
    %v286 = vsel %vm53, %v279, %v285
    %v287 = vmul.f32 %v286, %v227
    %289 = vrot.lane.b32.xlu0 %v286, 64
    %v290 = vpop.permute.xlu0 %289
    %v292 = vmul.f32 %v286, %v290
    %294 = vrot.lane.b32.xlu0 %v292, 32
    %v295 = vpop.permute.xlu0 %294
    %v297 = vadd.f32 %v287, %v295
    %v298 = vtanh.pop %v297
    %300 = vrot.lane.b32.xlu0 %v298, 64
    %v301 = vpop.permute.xlu0 %300
    %v303 = vmul.f32 %v286, %v301
    %vm304 = vcmp.gt.s32.totalorder %v48, 2
    %v305 = vsel %vm304, 1, 0
    %306 = vset.pattern.permute.xlu0 0
    %307 = vperm.xlu0 %306, %v305
    %v308 = vpop.permute.xlu0 %307
    %vm309 = vcmp.eq.s32.totalorder %v308, 1
    %v310 = vsel %vm309, %v303, %v226
    %v311 = vsel %vm309, %v297, %v227
    %v312 = vsel %vm309, %v303, 0.0
    %s313 = scalar_lea.vmem [#allocation2], 24
    %v314 = vld [vmem:[%s313] sm:$0xff]
    %v315 = vpack.c.bf16 %v310, %v310
    %317 = vrot.lane.b32.xlu0 %v315, 32
    %v318 = vpop.permute.xlu0 %317
    %v320 = vsel %vm67, %v318, 0
    %322 = vmatprep.subr.bf16.mxu0 0
    %323 = vmatpush1.bf16.msra.mxu0 0
    %324 = vmatprep.subr.bf16.mxu0 0
    %325 = vmatpush1.bf16.msra.mxu0 0
    %326 = vmatprep.subr.bf16.mxu0 0
    %327 = vmatpush1.bf16.msra.mxu0 0
    %328 = vmatprep.subr.bf16.mxu0 0
    %329 = vmatpush1.bf16.msra.mxu0 0
    %330 = vmatprep.subr.bf16.mxu0 0
    %331 = vmatpush1.bf16.msra.mxu0 0
    %332 = vmatprep.subr.bf16.mxu0 0
    %333 = vmatpush1.bf16.msra.mxu0 0
    %334 = vmatprep.subr.bf16.mxu0 0
    %335 = vmatpush1.bf16.msra.mxu0 %v64
    %336 = vmatprep.subr.bf16.mxu0 0
    %337 = vmatpush1.bf16.msra.mxu0 %v63
    %338 = vmatprep.subr.bf16.mxu0 0
    %339 = vmatpush2.bf16.msra.mxu0 0
    %340 = vmatprep.subr.bf16.mxu0 0
    %341 = vmatpush2.bf16.msra.mxu0 0
    %342 = vmatprep.subr.bf16.mxu0 0
    %343 = vmatpush2.bf16.msra.mxu0 0
    %344 = vmatprep.subr.bf16.mxu0 0
    %345 = vmatpush2.bf16.msra.mxu0 0
    %346 = vmatprep.subr.bf16.mxu0 0
    %347 = vmatpush2.bf16.msra.mxu0 0
    %348 = vmatprep.subr.bf16.mxu0 0
    %349 = vmatpush2.bf16.msra.mxu0 0
    %350 = vmatprep.subr.bf16.mxu0 0
    %351 = vmatpush2.bf16.msra.mxu0 0
    %352 = vmatprep.subr.bf16.mxu0 0
    %353 = vmatpush2.bf16.msra.mxu0 0
    %354 = vmatprep.mubr.bf16.mxu0 0
    %355 = vmatmul.mubr.bf16.gmra.mxu0 %v320
    %v356 = vpop.f32.mrf.mxu0
    %v357 = vadd.f32 0.0, %v356
    %v358 = vpop.f32.mrf.mxu0
    %v359 = vpop.f32.mrf.mxu0
    %v360 = vpop.f32.mrf.mxu0
    %361 = vdwg.mxu0
    %v362 = vadd.f32 %v314, %v357
    %v363 = vtanh.pop %v362
    %v364 = vxor.u32 %v362, 2147483648
    %v365 = vmul.f32 %v364, 1.442695
    %v366 = vpow.pop %v365
    %v367 = vadd.f32 %v366, 1.0
    %v368 = vrcp.pop %v367
    %v369 = vmul.f32 1.0, %v368
    %v370 = vsel %vm53, %v363, %v369
    %v371 = vmul.f32 %v370, %v311
    %373 = vrot.lane.b32.xlu0 %v370, 64
    %v374 = vpop.permute.xlu0 %373
    %v376 = vmul.f32 %v370, %v374
    %378 = vrot.lane.b32.xlu0 %v376, 32
    %v379 = vpop.permute.xlu0 %378
    %v381 = vadd.f32 %v371, %v379
    %v382 = vtanh.pop %v381
    %384 = vrot.lane.b32.xlu0 %v382, 64
    %v385 = vpop.permute.xlu0 %384
    %v387 = vmul.f32 %v370, %v385
    %vm388 = vcmp.gt.s32.totalorder %v48, 3
    %v389 = vsel %vm388, 1, 0
    %390 = vset.pattern.permute.xlu0 0
    %391 = vperm.xlu0 %390, %v389
    %v392 = vpop.permute.xlu0 %391
    %vm393 = vcmp.eq.s32.totalorder %v392, 1
    %v394 = vsel %vm393, %v387, %v310
    %v395 = vsel %vm393, %v381, %v311
    %v396 = vsel %vm393, %v387, 0.0
    %398 = vrot.lane.b32.xlu0 %v143, 32
    %v399 = vpop.permute.xlu0 %398
    %402 = vrot.lane.b32.xlu0 %v228, 64
    %v403 = vpop.permute.xlu0 %402
    %406 = vrot.lane.b32.xlu0 %v312, 96
    %v407 = vpop.permute.xlu0 %406
    %v409 = vsel %vm67, %v399, %v403
    %vm410 = vcmask 523264
    %v411 = vsel %vm410, %v409, %v407
    %vm412 = vcmask 785408
    %v413 = vsel %vm412, %v411, %v396
    %414 = vst [vmem:[#allocation7] sm:$0xff] %v413
    %s415 = scalar_lea.vmem [#allocation2], 32
    %v416 = vld [vmem:[%s415] sm:$0xff]
    %v417 = vpack.c.bf16 %v394, %v394
    %419 = vrot.lane.b32.xlu0 %v417, 32
    %v420 = vpop.permute.xlu0 %419
    %v422 = vsel %vm67, %v420, 0
    %424 = vmatprep.subr.bf16.mxu0 0
    %425 = vmatpush1.bf16.msra.mxu0 0
    %426 = vmatprep.subr.bf16.mxu0 0
    %427 = vmatpush1.bf16.msra.mxu0 0
    %428 = vmatprep.subr.bf16.mxu0 0
    %429 = vmatpush1.bf16.msra.mxu0 0
    %430 = vmatprep.subr.bf16.mxu0 0
    %431 = vmatpush1.bf16.msra.mxu0 0
    %432 = vmatprep.subr.bf16.mxu0 0
    %433 = vmatpush1.bf16.msra.mxu0 0
    %434 = vmatprep.subr.bf16.mxu0 0
    %435 = vmatpush1.bf16.msra.mxu0 0
    %436 = vmatprep.subr.bf16.mxu0 0
    %437 = vmatpush1.bf16.msra.mxu0 %v64
    %438 = vmatprep.subr.bf16.mxu0 0
    %439 = vmatpush1.bf16.msra.mxu0 %v63
    %440 = vmatprep.subr.bf16.mxu0 0
    %441 = vmatpush2.bf16.msra.mxu0 0
    %442 = vmatprep.subr.bf16.mxu0 0
    %443 = vmatpush2.bf16.msra.mxu0 0
    %444 = vmatprep.subr.bf16.mxu0 0
    %445 = vmatpush2.bf16.msra.mxu0 0
    %446 = vmatprep.subr.bf16.mxu0 0
    %447 = vmatpush2.bf16.msra.mxu0 0
    %448 = vmatprep.subr.bf16.mxu0 0
    %449 = vmatpush2.bf16.msra.mxu0 0
    %450 = vmatprep.subr.bf16.mxu0 0
    %451 = vmatpush2.bf16.msra.mxu0 0
    %452 = vmatprep.subr.bf16.mxu0 0
    %453 = vmatpush2.bf16.msra.mxu0 0
    %454 = vmatprep.subr.bf16.mxu0 0
    %455 = vmatpush2.bf16.msra.mxu0 0
    %456 = vmatprep.mubr.bf16.mxu0 0
    %457 = vmatmul.mubr.bf16.gmra.mxu0 %v422
    %v458 = vpop.f32.mrf.mxu0
    %v459 = vadd.f32 0.0, %v458
    %v460 = vpop.f32.mrf.mxu0
    %v461 = vpop.f32.mrf.mxu0
    %v462 = vpop.f32.mrf.mxu0
    %463 = vdwg.mxu0
    %v464 = vadd.f32 %v416, %v459
    %v465 = vtanh.pop %v464
    %v466 = vxor.u32 %v464, 2147483648
    %v467 = vmul.f32 %v466, 1.442695
    %v468 = vpow.pop %v467
    %v469 = vadd.f32 %v468, 1.0
    %v470 = vrcp.pop %v469
    %v471 = vmul.f32 1.0, %v470
    %v472 = vsel %vm53, %v465, %v471
    %v473 = vmul.f32 %v472, %v395
    %475 = vrot.lane.b32.xlu0 %v472, 64
    %v476 = vpop.permute.xlu0 %475
    %v478 = vmul.f32 %v472, %v476
    %480 = vrot.lane.b32.xlu0 %v478, 32
    %v481 = vpop.permute.xlu0 %480
    %v483 = vadd.f32 %v473, %v481
    %v484 = vtanh.pop %v483
    %486 = vrot.lane.b32.xlu0 %v484, 64
    %v487 = vpop.permute.xlu0 %486
    %v489 = vmul.f32 %v472, %v487
    %vm490 = vcmp.gt.s32.totalorder %v48, 4
    %v491 = vsel %vm490, 1, 0
    %492 = vset.pattern.permute.xlu0 0
    %493 = vperm.xlu0 %492, %v491
    %v494 = vpop.permute.xlu0 %493
    %vm495 = vcmp.eq.s32.totalorder %v494, 1
    %v496 = vsel %vm495, %v489, %v394
    %v497 = vsel %vm495, %v483, %v395
    %v498 = vsel %vm495, %v489, 0.0
    %s499 = scalar_lea.vmem [#allocation2], 40
    %v500 = vld [vmem:[%s499] sm:$0xff]
    %v501 = vpack.c.bf16 %v496, %v496
    %503 = vrot.lane.b32.xlu0 %v501, 32
    %v504 = vpop.permute.xlu0 %503
    %v506 = vsel %vm67, %v504, 0
    %508 = vmatprep.subr.bf16.mxu0 0
    %509 = vmatpush1.bf16.msra.mxu0 0
    %510 = vmatprep.subr.bf16.mxu0 0
    %511 = vmatpush1.bf16.msra.mxu0 0
    %512 = vmatprep.subr.bf16.mxu0 0
    %513 = vmatpush1.bf16.msra.mxu0 0
    %514 = vmatprep.subr.bf16.mxu0 0
    %515 = vmatpush1.bf16.msra.mxu0 0
    %516 = vmatprep.subr.bf16.mxu0 0
    %517 = vmatpush1.bf16.msra.mxu0 0
    %518 = vmatprep.subr.bf16.mxu0 0
    %519 = vmatpush1.bf16.msra.mxu0 0
    %520 = vmatprep.subr.bf16.mxu0 0
    %521 = vmatpush1.bf16.msra.mxu0 %v64
    %522 = vmatprep.subr.bf16.mxu0 0
    %523 = vmatpush1.bf16.msra.mxu0 %v63
    %524 = vmatprep.subr.bf16.mxu0 0
    %525 = vmatpush2.bf16.msra.mxu0 0
    %526 = vmatprep.subr.bf16.mxu0 0
    %527 = vmatpush2.bf16.msra.mxu0 0
    %528 = vmatprep.subr.bf16.mxu0 0
    %529 = vmatpush2.bf16.msra.mxu0 0
    %530 = vmatprep.subr.bf16.mxu0 0
    %531 = vmatpush2.bf16.msra.mxu0 0
    %532 = vmatprep.subr.bf16.mxu0 0
    %533 = vmatpush2.bf16.msra.mxu0 0
    %534 = vmatprep.subr.bf16.mxu0 0
    %535 = vmatpush2.bf16.msra.mxu0 0
    %536 = vmatprep.subr.bf16.mxu0 0
    %537 = vmatpush2.bf16.msra.mxu0 0
    %538 = vmatprep.subr.bf16.mxu0 0
    %539 = vmatpush2.bf16.msra.mxu0 0
    %540 = vmatprep.mubr.bf16.mxu0 0
    %541 = vmatmul.mubr.bf16.gmra.mxu0 %v506
    %v542 = vpop.f32.mrf.mxu0
    %v543 = vadd.f32 0.0, %v542
    %v544 = vpop.f32.mrf.mxu0
    %v545 = vpop.f32.mrf.mxu0
    %v546 = vpop.f32.mrf.mxu0
    %547 = vdwg.mxu0
    %v548 = vadd.f32 %v500, %v543
    %v549 = vtanh.pop %v548
    %v550 = vxor.u32 %v548, 2147483648
    %v551 = vmul.f32 %v550, 1.442695
    %v552 = vpow.pop %v551
    %v553 = vadd.f32 %v552, 1.0
    %v554 = vrcp.pop %v553
    %v555 = vmul.f32 1.0, %v554
    %v556 = vsel %vm53, %v549, %v555
    %v557 = vmul.f32 %v556, %v497
    %559 = vrot.lane.b32.xlu0 %v556, 64
    %v560 = vpop.permute.xlu0 %559
    %v562 = vmul.f32 %v556, %v560
    %564 = vrot.lane.b32.xlu0 %v562, 32
    %v565 = vpop.permute.xlu0 %564
    %v567 = vadd.f32 %v557, %v565
    %v568 = vtanh.pop %v567
    %570 = vrot.lane.b32.xlu0 %v568, 64
    %v571 = vpop.permute.xlu0 %570
    %v573 = vmul.f32 %v556, %v571
    %vm574 = vcmp.gt.s32.totalorder %v48, 5
    %v575 = vsel %vm574, 1, 0
    %576 = vset.pattern.permute.xlu0 0
    %577 = vperm.xlu0 %576, %v575
    %v578 = vpop.permute.xlu0 %577
    %vm579 = vcmp.eq.s32.totalorder %v578, 1
    %v580 = vsel %vm579, %v573, %v496
    %v581 = vsel %vm579, %v567, %v497
    %v582 = vsel %vm579, %v573, 0.0
    %s583 = scalar_lea.vmem [#allocation2], 48
    %v584 = vld [vmem:[%s583] sm:$0xff]
    %v585 = vpack.c.bf16 %v580, %v580
    %587 = vrot.lane.b32.xlu0 %v585, 32
    %v588 = vpop.permute.xlu0 %587
    %v590 = vsel %vm67, %v588, 0
    %592 = vmatprep.subr.bf16.mxu0 0
    %593 = vmatpush1.bf16.msra.mxu0 0
    %594 = vmatprep.subr.bf16.mxu0 0
    %595 = vmatpush1.bf16.msra.mxu0 0
    %596 = vmatprep.subr.bf16.mxu0 0
    %597 = vmatpush1.bf16.msra.mxu0 0
    %598 = vmatprep.subr.bf16.mxu0 0
    %599 = vmatpush1.bf16.msra.mxu0 0
    %600 = vmatprep.subr.bf16.mxu0 0
    %601 = vmatpush1.bf16.msra.mxu0 0
    %602 = vmatprep.subr.bf16.mxu0 0
    %603 = vmatpush1.bf16.msra.mxu0 0
    %604 = vmatprep.subr.bf16.mxu0 0
    %605 = vmatpush1.bf16.msra.mxu0 %v64
    %606 = vmatprep.subr.bf16.mxu0 0
    %607 = vmatpush1.bf16.msra.mxu0 %v63
    %608 = vmatprep.subr.bf16.mxu0 0
    %609 = vmatpush2.bf16.msra.mxu0 0
    %610 = vmatprep.subr.bf16.mxu0 0
    %611 = vmatpush2.bf16.msra.mxu0 0
    %612 = vmatprep.subr.bf16.mxu0 0
    %613 = vmatpush2.bf16.msra.mxu0 0
    %614 = vmatprep.subr.bf16.mxu0 0
    %615 = vmatpush2.bf16.msra.mxu0 0
    %616 = vmatprep.subr.bf16.mxu0 0
    %617 = vmatpush2.bf16.msra.mxu0 0
    %618 = vmatprep.subr.bf16.mxu0 0
    %619 = vmatpush2.bf16.msra.mxu0 0
    %620 = vmatprep.subr.bf16.mxu0 0
    %621 = vmatpush2.bf16.msra.mxu0 0
    %622 = vmatprep.subr.bf16.mxu0 0
    %623 = vmatpush2.bf16.msra.mxu0 0
    %624 = vmatprep.mubr.bf16.mxu0 0
    %625 = vmatmul.mubr.bf16.gmra.mxu0 %v590
    %v626 = vpop.f32.mrf.mxu0
    %v627 = vadd.f32 0.0, %v626
    %v628 = vpop.f32.mrf.mxu0
    %v629 = vpop.f32.mrf.mxu0
    %v630 = vpop.f32.mrf.mxu0
    %631 = vdwg.mxu0
    %v632 = vadd.f32 %v584, %v627
    %v633 = vtanh.pop %v632
    %v634 = vxor.u32 %v632, 2147483648
    %v635 = vmul.f32 %v634, 1.442695
    %v636 = vpow.pop %v635
    %v637 = vadd.f32 %v636, 1.0
    %v638 = vrcp.pop %v637
    %v639 = vmul.f32 1.0, %v638
    %v640 = vsel %vm53, %v633, %v639
    %v641 = vmul.f32 %v640, %v581
    %643 = vrot.lane.b32.xlu0 %v640, 64
    %v644 = vpop.permute.xlu0 %643
    %v646 = vmul.f32 %v640, %v644
    %648 = vrot.lane.b32.xlu0 %v646, 32
    %v649 = vpop.permute.xlu0 %648
    %v651 = vadd.f32 %v641, %v649
    %v652 = vtanh.pop %v651
    %654 = vrot.lane.b32.xlu0 %v652, 64
    %v655 = vpop.permute.xlu0 %654
    %v657 = vmul.f32 %v640, %v655
    %vm658 = vcmp.gt.s32.totalorder %v48, 6
    %v659 = vsel %vm658, 1, 0
    %660 = vset.pattern.permute.xlu0 0
    %661 = vperm.xlu0 %660, %v659
    %v662 = vpop.permute.xlu0 %661
    %vm663 = vcmp.eq.s32.totalorder %v662, 1
    %v664 = vsel %vm663, %v657, %v580
    %v665 = vsel %vm663, %v651, %v581
    %v666 = vsel %vm663, %v657, 0.0
    %s667 = scalar_lea.vmem [#allocation2], 56
    %v668 = vld [vmem:[%s667] sm:$0xff]
    %v669 = vpack.c.bf16 %v664, %v664
    %671 = vrot.lane.b32.xlu0 %v669, 32
    %v672 = vpop.permute.xlu0 %671
    %v674 = vsel %vm67, %v672, 0
    %676 = vmatprep.subr.bf16.mxu0 0
    %677 = vmatpush1.bf16.msra.mxu0 0
    %678 = vmatprep.subr.bf16.mxu0 0
    %679 = vmatpush1.bf16.msra.mxu0 0
    %680 = vmatprep.subr.bf16.mxu0 0
    %681 = vmatpush1.bf16.msra.mxu0 0
    %682 = vmatprep.subr.bf16.mxu0 0
    %683 = vmatpush1.bf16.msra.mxu0 0
    %684 = vmatprep.subr.bf16.mxu0 0
    %685 = vmatpush1.bf16.msra.mxu0 0
    %686 = vmatprep.subr.bf16.mxu0 0
    %687 = vmatpush1.bf16.msra.mxu0 0
    %688 = vmatprep.subr.bf16.mxu0 0
    %689 = vmatpush1.bf16.msra.mxu0 %v64
    %690 = vmatprep.subr.bf16.mxu0 0
    %691 = vmatpush1.bf16.msra.mxu0 %v63
    %692 = vmatprep.subr.bf16.mxu0 0
    %693 = vmatpush2.bf16.msra.mxu0 0
    %694 = vmatprep.subr.bf16.mxu0 0
    %695 = vmatpush2.bf16.msra.mxu0 0
    %696 = vmatprep.subr.bf16.mxu0 0
    %697 = vmatpush2.bf16.msra.mxu0 0
    %698 = vmatprep.subr.bf16.mxu0 0
    %699 = vmatpush2.bf16.msra.mxu0 0
    %700 = vmatprep.subr.bf16.mxu0 0
    %701 = vmatpush2.bf16.msra.mxu0 0
    %702 = vmatprep.subr.bf16.mxu0 0
    %703 = vmatpush2.bf16.msra.mxu0 0
    %704 = vmatprep.subr.bf16.mxu0 0
    %705 = vmatpush2.bf16.msra.mxu0 0
    %706 = vmatprep.subr.bf16.mxu0 0
    %707 = vmatpush2.bf16.msra.mxu0 0
    %708 = vmatprep.mubr.bf16.mxu0 0
    %709 = vmatmul.mubr.bf16.gmra.mxu0 %v674
    %v710 = vpop.f32.mrf.mxu0
    %v711 = vadd.f32 0.0, %v710
    %v712 = vpop.f32.mrf.mxu0
    %v713 = vpop.f32.mrf.mxu0
    %v714 = vpop.f32.mrf.mxu0
    %715 = vdwg.mxu0
    %v716 = vadd.f32 %v668, %v711
    %v717 = vtanh.pop %v716
    %v718 = vxor.u32 %v716, 2147483648
    %v719 = vmul.f32 %v718, 1.442695
    %v720 = vpow.pop %v719
    %v721 = vadd.f32 %v720, 1.0
    %v722 = vrcp.pop %v721
    %v723 = vmul.f32 1.0, %v722
    %v724 = vsel %vm53, %v717, %v723
    %v725 = vmul.f32 %v724, %v665
    %727 = vrot.lane.b32.xlu0 %v724, 64
    %v728 = vpop.permute.xlu0 %727
    %v730 = vmul.f32 %v724, %v728
    %732 = vrot.lane.b32.xlu0 %v730, 32
    %v733 = vpop.permute.xlu0 %732
    %v735 = vadd.f32 %v725, %v733
    %v736 = vtanh.pop %v735
    %738 = vrot.lane.b32.xlu0 %v736, 64
    %v739 = vpop.permute.xlu0 %738
    %v741 = vmul.f32 %v724, %v739
    %vm742 = vcmp.gt.s32.totalorder %v48, 7
    %v743 = vsel %vm742, 1, 0
    %744 = vset.pattern.permute.xlu0 0
    %745 = vperm.xlu0 %744, %v743
    %v746 = vpop.permute.xlu0 %745
    %vm747 = vcmp.eq.s32.totalorder %v746, 1
    %v748 = vsel %vm747, %v741, %v664
    %v749 = vsel %vm747, %v735, %v665
    %v750 = vsel %vm747, %v741, 0.0
    %752 = vrot.lane.b32.xlu0 %v498, 32
    %v753 = vpop.permute.xlu0 %752
    %756 = vrot.lane.b32.xlu0 %v582, 64
    %v757 = vpop.permute.xlu0 %756
    %760 = vrot.lane.b32.xlu0 %v666, 96
    %v761 = vpop.permute.xlu0 %760
    %v763 = vsel %vm67, %v753, %v757
    %v764 = vsel %vm410, %v763, %v761
    %v765 = vsel %vm412, %v764, %v750
    %s766 = scalar_lea.vmem [#allocation7], 8
    %767 = vst [vmem:[%s766] sm:$0xff] %v765
    %s768 = scalar_lea.vmem [#allocation2], 64
    %v769 = vld [vmem:[%s768] sm:$0xff]
    %v770 = vpack.c.bf16 %v748, %v748
    %772 = vrot.lane.b32.xlu0 %v770, 32
    %v773 = vpop.permute.xlu0 %772
    %v775 = vsel %vm67, %v773, 0
    %777 = vmatprep.subr.bf16.mxu0 0
    %778 = vmatpush1.bf16.msra.mxu0 0
    %779 = vmatprep.subr.bf16.mxu0 0
    %780 = vmatpush1.bf16.msra.mxu0 0
    %781 = vmatprep.subr.bf16.mxu0 0
    %782 = vmatpush1.bf16.msra.mxu0 0
    %783 = vmatprep.subr.bf16.mxu0 0
    %784 = vmatpush1.bf16.msra.mxu0 0
    %785 = vmatprep.subr.bf16.mxu0 0
    %786 = vmatpush1.bf16.msra.mxu0 0
    %787 = vmatprep.subr.bf16.mxu0 0
    %788 = vmatpush1.bf16.msra.mxu0 0
    %789 = vmatprep.subr.bf16.mxu0 0
    %790 = vmatpush1.bf16.msra.mxu0 %v64
    %791 = vmatprep.subr.bf16.mxu0 0
    %792 = vmatpush1.bf16.msra.mxu0 %v63
    %793 = vmatprep.subr.bf16.mxu0 0
    %794 = vmatpush2.bf16.msra.mxu0 0
    %795 = vmatprep.subr.bf16.mxu0 0
    %796 = vmatpush2.bf16.msra.mxu0 0
    %797 = vmatprep.subr.bf16.mxu0 0
    %798 = vmatpush2.bf16.msra.mxu0 0
    %799 = vmatprep.subr.bf16.mxu0 0
    %800 = vmatpush2.bf16.msra.mxu0 0
    %801 = vmatprep.subr.bf16.mxu0 0
    %802 = vmatpush2.bf16.msra.mxu0 0
    %803 = vmatprep.subr.bf16.mxu0 0
    %804 = vmatpush2.bf16.msra.mxu0 0
    %805 = vmatprep.subr.bf16.mxu0 0
    %806 = vmatpush2.bf16.msra.mxu0 0
    %807 = vmatprep.subr.bf16.mxu0 0
    %808 = vmatpush2.bf16.msra.mxu0 0
    %809 = vmatprep.mubr.bf16.mxu0 0
    %810 = vmatmul.mubr.bf16.gmra.mxu0 %v775
    %v811 = vpop.f32.mrf.mxu0
    %v812 = vadd.f32 0.0, %v811
    %v813 = vpop.f32.mrf.mxu0
    %v814 = vpop.f32.mrf.mxu0
    %v815 = vpop.f32.mrf.mxu0
    %816 = vdwg.mxu0
    %v817 = vadd.f32 %v769, %v812
    %v818 = vtanh.pop %v817
    %v819 = vxor.u32 %v817, 2147483648
    %v820 = vmul.f32 %v819, 1.442695
    %v821 = vpow.pop %v820
    %v822 = vadd.f32 %v821, 1.0
    %v823 = vrcp.pop %v822
    %v824 = vmul.f32 1.0, %v823
    %v825 = vsel %vm53, %v818, %v824
    %v826 = vmul.f32 %v825, %v749
    %828 = vrot.lane.b32.xlu0 %v825, 64
    %v829 = vpop.permute.xlu0 %828
    %v831 = vmul.f32 %v825, %v829
    %833 = vrot.lane.b32.xlu0 %v831, 32
    %v834 = vpop.permute.xlu0 %833
    %v836 = vadd.f32 %v826, %v834
    %v837 = vtanh.pop %v836
    %839 = vrot.lane.b32.xlu0 %v837, 64
    %v840 = vpop.permute.xlu0 %839
    %v842 = vmul.f32 %v825, %v840
    %vm843 = vcmp.gt.s32.totalorder %v48, 8
    %v844 = vsel %vm843, 1, 0
    %845 = vset.pattern.permute.xlu0 0
    %846 = vperm.xlu0 %845, %v844
    %v847 = vpop.permute.xlu0 %846
    %vm848 = vcmp.eq.s32.totalorder %v847, 1
    %v849 = vsel %vm848, %v842, %v748
    %v850 = vsel %vm848, %v836, %v749
    %v851 = vsel %vm848, %v842, 0.0
    %s852 = scalar_lea.vmem [#allocation2], 72
    %v853 = vld [vmem:[%s852] sm:$0xff]
    %v854 = vpack.c.bf16 %v849, %v849
    %856 = vrot.lane.b32.xlu0 %v854, 32
    %v857 = vpop.permute.xlu0 %856
    %v859 = vsel %vm67, %v857, 0
    %861 = vmatprep.subr.bf16.mxu0 0
    %862 = vmatpush1.bf16.msra.mxu0 0
    %863 = vmatprep.subr.bf16.mxu0 0
    %864 = vmatpush1.bf16.msra.mxu0 0
    %865 = vmatprep.subr.bf16.mxu0 0
    %866 = vmatpush1.bf16.msra.mxu0 0
    %867 = vmatprep.subr.bf16.mxu0 0
    %868 = vmatpush1.bf16.msra.mxu0 0
    %869 = vmatprep.subr.bf16.mxu0 0
    %870 = vmatpush1.bf16.msra.mxu0 0
    %871 = vmatprep.subr.bf16.mxu0 0
    %872 = vmatpush1.bf16.msra.mxu0 0
    %873 = vmatprep.subr.bf16.mxu0 0
    %874 = vmatpush1.bf16.msra.mxu0 %v64
    %875 = vmatprep.subr.bf16.mxu0 0
    %876 = vmatpush1.bf16.msra.mxu0 %v63
    %877 = vmatprep.subr.bf16.mxu0 0
    %878 = vmatpush2.bf16.msra.mxu0 0
    %879 = vmatprep.subr.bf16.mxu0 0
    %880 = vmatpush2.bf16.msra.mxu0 0
    %881 = vmatprep.subr.bf16.mxu0 0
    %882 = vmatpush2.bf16.msra.mxu0 0
    %883 = vmatprep.subr.bf16.mxu0 0
    %884 = vmatpush2.bf16.msra.mxu0 0
    %885 = vmatprep.subr.bf16.mxu0 0
    %886 = vmatpush2.bf16.msra.mxu0 0
    %887 = vmatprep.subr.bf16.mxu0 0
    %888 = vmatpush2.bf16.msra.mxu0 0
    %889 = vmatprep.subr.bf16.mxu0 0
    %890 = vmatpush2.bf16.msra.mxu0 0
    %891 = vmatprep.subr.bf16.mxu0 0
    %892 = vmatpush2.bf16.msra.mxu0 0
    %893 = vmatprep.mubr.bf16.mxu0 0
    %894 = vmatmul.mubr.bf16.gmra.mxu0 %v859
    %v895 = vpop.f32.mrf.mxu0
    %v896 = vadd.f32 0.0, %v895
    %v897 = vpop.f32.mrf.mxu0
    %v898 = vpop.f32.mrf.mxu0
    %v899 = vpop.f32.mrf.mxu0
    %900 = vdwg.mxu0
    %v901 = vadd.f32 %v853, %v896
    %v902 = vtanh.pop %v901
    %v903 = vxor.u32 %v901, 2147483648
    %v904 = vmul.f32 %v903, 1.442695
    %v905 = vpow.pop %v904
    %v906 = vadd.f32 %v905, 1.0
    %v907 = vrcp.pop %v906
    %v908 = vmul.f32 1.0, %v907
    %v909 = vsel %vm53, %v902, %v908
    %v910 = vmul.f32 %v909, %v850
    %912 = vrot.lane.b32.xlu0 %v909, 64
    %v913 = vpop.permute.xlu0 %912
    %v915 = vmul.f32 %v909, %v913
    %917 = vrot.lane.b32.xlu0 %v915, 32
    %v918 = vpop.permute.xlu0 %917
    %v920 = vadd.f32 %v910, %v918
    %v921 = vtanh.pop %v920
    %923 = vrot.lane.b32.xlu0 %v921, 64
    %v924 = vpop.permute.xlu0 %923
    %v926 = vmul.f32 %v909, %v924
    %vm927 = vcmp.gt.s32.totalorder %v48, 9
    %v928 = vsel %vm927, 1, 0
    %929 = vset.pattern.permute.xlu0 0
    %930 = vperm.xlu0 %929, %v928
    %v931 = vpop.permute.xlu0 %930
    %vm932 = vcmp.eq.s32.totalorder %v931, 1
    %v933 = vsel %vm932, %v926, %v849
    %v934 = vsel %vm932, %v920, %v850
    %v935 = vsel %vm932, %v926, 0.0
    %s936 = scalar_lea.vmem [#allocation2], 80
    %v937 = vld [vmem:[%s936] sm:$0xff]
    %v938 = vpack.c.bf16 %v933, %v933
    %940 = vrot.lane.b32.xlu0 %v938, 32
    %v941 = vpop.permute.xlu0 %940
    %v943 = vsel %vm67, %v941, 0
    %945 = vmatprep.subr.bf16.mxu0 0
    %946 = vmatpush1.bf16.msra.mxu0 0
    %947 = vmatprep.subr.bf16.mxu0 0
    %948 = vmatpush1.bf16.msra.mxu0 0
    %949 = vmatprep.subr.bf16.mxu0 0
    %950 = vmatpush1.bf16.msra.mxu0 0
    %951 = vmatprep.subr.bf16.mxu0 0
    %952 = vmatpush1.bf16.msra.mxu0 0
    %953 = vmatprep.subr.bf16.mxu0 0
    %954 = vmatpush1.bf16.msra.mxu0 0
    %955 = vmatprep.subr.bf16.mxu0 0
    %956 = vmatpush1.bf16.msra.mxu0 0
    %957 = vmatprep.subr.bf16.mxu0 0
    %958 = vmatpush1.bf16.msra.mxu0 %v64
    %959 = vmatprep.subr.bf16.mxu0 0
    %960 = vmatpush1.bf16.msra.mxu0 %v63
    %961 = vmatprep.subr.bf16.mxu0 0
    %962 = vmatpush2.bf16.msra.mxu0 0
    %963 = vmatprep.subr.bf16.mxu0 0
    %964 = vmatpush2.bf16.msra.mxu0 0
    %965 = vmatprep.subr.bf16.mxu0 0
    %966 = vmatpush2.bf16.msra.mxu0 0
    %967 = vmatprep.subr.bf16.mxu0 0
    %968 = vmatpush2.bf16.msra.mxu0 0
    %969 = vmatprep.subr.bf16.mxu0 0
    %970 = vmatpush2.bf16.msra.mxu0 0
    %971 = vmatprep.subr.bf16.mxu0 0
    %972 = vmatpush2.bf16.msra.mxu0 0
    %973 = vmatprep.subr.bf16.mxu0 0
    %974 = vmatpush2.bf16.msra.mxu0 0
    %975 = vmatprep.subr.bf16.mxu0 0
    %976 = vmatpush2.bf16.msra.mxu0 0
    %977 = vmatprep.mubr.bf16.mxu0 0
    %978 = vmatmul.mubr.bf16.gmra.mxu0 %v943
    %v979 = vpop.f32.mrf.mxu0
    %v980 = vadd.f32 0.0, %v979
    %v981 = vpop.f32.mrf.mxu0
    %v982 = vpop.f32.mrf.mxu0
    %v983 = vpop.f32.mrf.mxu0
    %984 = vdwg.mxu0
    %v985 = vadd.f32 %v937, %v980
    %v986 = vtanh.pop %v985
    %v987 = vxor.u32 %v985, 2147483648
    %v988 = vmul.f32 %v987, 1.442695
    %v989 = vpow.pop %v988
    %v990 = vadd.f32 %v989, 1.0
    %v991 = vrcp.pop %v990
    %v992 = vmul.f32 1.0, %v991
    %v993 = vsel %vm53, %v986, %v992
    %v994 = vmul.f32 %v993, %v934
    %996 = vrot.lane.b32.xlu0 %v993, 64
    %v997 = vpop.permute.xlu0 %996
    %v999 = vmul.f32 %v993, %v997
    %1001 = vrot.lane.b32.xlu0 %v999, 32
    %v1002 = vpop.permute.xlu0 %1001
    %v1004 = vadd.f32 %v994, %v1002
    %v1005 = vtanh.pop %v1004
    %1007 = vrot.lane.b32.xlu0 %v1005, 64
    %v1008 = vpop.permute.xlu0 %1007
    %v1010 = vmul.f32 %v993, %v1008
    %vm1011 = vcmp.gt.s32.totalorder %v48, 10
    %v1012 = vsel %vm1011, 1, 0
    %1013 = vset.pattern.permute.xlu0 0
    %1014 = vperm.xlu0 %1013, %v1012
    %v1015 = vpop.permute.xlu0 %1014
    %vm1016 = vcmp.eq.s32.totalorder %v1015, 1
    %v1017 = vsel %vm1016, %v1010, %v933
    %v1018 = vsel %vm1016, %v1004, %v934
    %v1019 = vsel %vm1016, %v1010, 0.0
    %s1020 = scalar_lea.vmem [#allocation2], 88
    %v1021 = vld [vmem:[%s1020] sm:$0xff]
    %v1022 = vpack.c.bf16 %v1017, %v1017
    %1024 = vrot.lane.b32.xlu0 %v1022, 32
    %v1025 = vpop.permute.xlu0 %1024
    %v1027 = vsel %vm67, %v1025, 0
    %1029 = vmatprep.subr.bf16.mxu0 0
    %1030 = vmatpush1.bf16.msra.mxu0 0
    %1031 = vmatprep.subr.bf16.mxu0 0
    %1032 = vmatpush1.bf16.msra.mxu0 0
    %1033 = vmatprep.subr.bf16.mxu0 0
    %1034 = vmatpush1.bf16.msra.mxu0 0
    %1035 = vmatprep.subr.bf16.mxu0 0
    %1036 = vmatpush1.bf16.msra.mxu0 0
    %1037 = vmatprep.subr.bf16.mxu0 0
    %1038 = vmatpush1.bf16.msra.mxu0 0
    %1039 = vmatprep.subr.bf16.mxu0 0
    %1040 = vmatpush1.bf16.msra.mxu0 0
    %1041 = vmatprep.subr.bf16.mxu0 0
    %1042 = vmatpush1.bf16.msra.mxu0 %v64
    %1043 = vmatprep.subr.bf16.mxu0 0
    %1044 = vmatpush1.bf16.msra.mxu0 %v63
    %1045 = vmatprep.subr.bf16.mxu0 0
    %1046 = vmatpush2.bf16.msra.mxu0 0
    %1047 = vmatprep.subr.bf16.mxu0 0
    %1048 = vmatpush2.bf16.msra.mxu0 0
    %1049 = vmatprep.subr.bf16.mxu0 0
    %1050 = vmatpush2.bf16.msra.mxu0 0
    %1051 = vmatprep.subr.bf16.mxu0 0
    %1052 = vmatpush2.bf16.msra.mxu0 0
    %1053 = vmatprep.subr.bf16.mxu0 0
    %1054 = vmatpush2.bf16.msra.mxu0 0
    %1055 = vmatprep.subr.bf16.mxu0 0
    %1056 = vmatpush2.bf16.msra.mxu0 0
    %1057 = vmatprep.subr.bf16.mxu0 0
    %1058 = vmatpush2.bf16.msra.mxu0 0
    %1059 = vmatprep.subr.bf16.mxu0 0
    %1060 = vmatpush2.bf16.msra.mxu0 0
    %1061 = vmatprep.mubr.bf16.mxu0 0
    %1062 = vmatmul.mubr.bf16.gmra.mxu0 %v1027
    %v1063 = vpop.f32.mrf.mxu0
    %v1064 = vadd.f32 0.0, %v1063
    %v1065 = vpop.f32.mrf.mxu0
    %v1066 = vpop.f32.mrf.mxu0
    %v1067 = vpop.f32.mrf.mxu0
    %1068 = vdwg.mxu0
    %v1069 = vadd.f32 %v1021, %v1064
    %v1070 = vtanh.pop %v1069
    %v1071 = vxor.u32 %v1069, 2147483648
    %v1072 = vmul.f32 %v1071, 1.442695
    %v1073 = vpow.pop %v1072
    %v1074 = vadd.f32 %v1073, 1.0
    %v1075 = vrcp.pop %v1074
    %v1076 = vmul.f32 1.0, %v1075
    %v1077 = vsel %vm53, %v1070, %v1076
    %v1078 = vmul.f32 %v1077, %v1018
    %1080 = vrot.lane.b32.xlu0 %v1077, 64
    %v1081 = vpop.permute.xlu0 %1080
    %v1083 = vmul.f32 %v1077, %v1081
    %1085 = vrot.lane.b32.xlu0 %v1083, 32
    %v1086 = vpop.permute.xlu0 %1085
    %v1088 = vadd.f32 %v1078, %v1086
    %v1089 = vtanh.pop %v1088
    %1091 = vrot.lane.b32.xlu0 %v1089, 64
    %v1092 = vpop.permute.xlu0 %1091
    %v1094 = vmul.f32 %v1077, %v1092
    %vm1095 = vcmp.gt.s32.totalorder %v48, 11
    %v1096 = vsel %vm1095, 1, 0
    %1097 = vset.pattern.permute.xlu0 0
    %1098 = vperm.xlu0 %1097, %v1096
    %v1099 = vpop.permute.xlu0 %1098
    %vm1100 = vcmp.eq.s32.totalorder %v1099, 1
    %v1101 = vsel %vm1100, %v1094, 0.0
    %1103 = vrot.lane.b32.xlu0 %v851, 32
    %v1104 = vpop.permute.xlu0 %1103
    %1107 = vrot.lane.b32.xlu0 %v935, 64
    %v1108 = vpop.permute.xlu0 %1107
    %1111 = vrot.lane.b32.xlu0 %v1019, 96
    %v1112 = vpop.permute.xlu0 %1111
    %v1114 = vsel %vm67, %v1104, %v1108
    %v1115 = vsel %vm410, %v1114, %v1112
    %v1116 = vsel %vm412, %v1115, %v1101
    %s1117 = scalar_lea.vmem [#allocation7], 16
    %1118 = vst [vmem:[%s1117] sm:$0xff] %v1116
    // Predicated region
    $region22: #{tpu_custom_call.1} parent=1 // pred_check
      _
    $region23: #{tpu_custom_call.1} parent=1 // pred_check_branch
      %1120 = sbr.rel (0) target = $region25
    $region24: #{tpu_custom_call.1} parent=1 // pred_region
      %s1122 = ssub.s32 384, 384
      %1123 = vsyncadd [#allocation4], %s1122
      %s1124 = sshll.u32 [#allocation7], 4
      %s1125 = int_to_ptr.vmem [resolvable:$true] %s1124
      %1130 = dma.vmem_to_hbm [thread:$0]  %s1125, 384, %s3, [#allocation4], 128, 128, 8
    $region25: #{tpu_custom_call.1} parent=1 // pred_fallthru
      _
    // Predicated region
    $region26: #{tpu_custom_call.1} parent=1 // pred_check
      _
    $region27: #{tpu_custom_call.1} parent=1 // pred_check_branch
      %1132 = sbr.rel (0) target = $region29
    $region28: #{tpu_custom_call.1} parent=1 // pred_region
      %1133 = dma.done [#allocation4], 384
    $region29: #{tpu_custom_call.1} parent=1 // pred_fallthru
      _
    %1134 = vsyncpa [#allocation3], 1
    %1135 = vsyncpa [#allocation6], 1
    %1136 = vsyncpa [#allocation4], 1

</llo_original>
